<compile_context>
chip_gen: v6e
topology: v6e:2x2x1
jax: 0.10.0
libtpu: 0.0.40
codegen_flags: <defaults>
</compile_context>

<pallas_src>
import functools

import jax
import jax.numpy as jnp
from jax import lax
from jax.experimental import pallas as pl
from jax.experimental.pallas import tpu as pltpu

EPS = 1e-5


# ----------------------------- in-kernel helpers -----------------------------

def _im2col(x, hout, wout):
    """x: (n, h, w, c) f32 -> (n*hout*wout, 9*c) patch matrix (kh-major, kw, c-minor)."""
    n, _, _, c = x.shape
    taps = []
    for kh in range(3):
        for kw in range(3):
            taps.append(x[:, kh:kh + hout, kw:kw + wout, :])
    patches = jnp.concatenate(taps, axis=-1)              # (n, hout, wout, 9*c)
    return patches.reshape(n * hout * wout, 9 * c)


def _conv3x3_mxu(x, w_ref, hout, wout):
    """3x3 VALID conv as a single MXU matmul. x: f32 NHWC; w_ref: (9*Cin, Cout) bf16."""
    patches = _im2col(x, hout, wout).astype(jnp.bfloat16)
    acc = jnp.dot(patches, w_ref[...], preferred_element_type=jnp.float32)
    # NOTE: conv bias intentionally omitted — the BatchNorm mean subtraction that always
    # follows cancels any per-channel bias exactly.
    return acc                                            # (n*hout*wout, Cout) f32


def _accumulate_stats(acc, sum_ref, sumsq_ref):
    """One-pass per-channel sum / sum-of-squares, accumulated across batch grid steps."""
    @pl.when(pl.program_id(0) == 0)
    def _():
        sum_ref[...] = jnp.zeros_like(sum_ref)
        sumsq_ref[...] = jnp.zeros_like(sumsq_ref)
    sum_ref[...] += jnp.sum(acc, axis=0, keepdims=True)
    sumsq_ref[...] += jnp.sum(acc * acc, axis=0, keepdims=True)


def _bn_scale_shift(sum_ref, sumsq_ref, g_ref, be_ref, count):
    """Fold training-mode BN (biased variance) + affine into per-channel scale/shift."""
    mu = sum_ref[...] / count                             # (1, C)
    var = sumsq_ref[...] / count - mu * mu                # biased variance
    scale = lax.rsqrt(var + EPS) * g_ref[...]
    shift = be_ref[...] - mu * scale
    return scale, shift


# --------------------------------- kernels -----------------------------------

def conv1_stats_kernel(x_ref, w1_ref, y1_ref, sum1_ref, sumsq1_ref, *, hout, wout):
    x = x_ref[...].astype(jnp.float32)                    # (1, H, W, Cin)
    acc = _conv3x3_mxu(x, w1_ref, hout, wout)             # (hout*wout, Cout) f32
    _accumulate_stats(acc, sum1_ref, sumsq1_ref)
    y1_ref[...] = acc.reshape(y1_ref.shape)


def bn1_conv2_stats_kernel(y1_ref, w2_ref, g1_ref, be1_ref, sum1_ref, sumsq1_ref,
                           y2_ref, sum2_ref, sumsq2_ref, *, count1, hout, wout):
    scale, shift = _bn_scale_shift(sum1_ref, sumsq1_ref, g1_ref, be1_ref, count1)
    a = jnp.maximum(y1_ref[...] * scale.reshape(1, 1, 1, -1)
                    + shift.reshape(1, 1, 1, -1), 0.0)    # BN1 + ReLU (f32)
    acc = _conv3x3_mxu(a, w2_ref, hout, wout)             # conv2 (f32 accumulation)
    _accumulate_stats(acc, sum2_ref, sumsq2_ref)
    y2_ref[...] = acc.reshape(y2_ref.shape)


def bn2_pool_kernel(y2_ref, g2_ref, be2_ref, sum2_ref, sumsq2_ref, o_ref, *, count2):
    scale, shift = _bn_scale_shift(sum2_ref, sumsq2_ref, g2_ref, be2_ref, count2)
    y = jnp.maximum(y2_ref[...] * scale.reshape(1, 1, 1, -1)
                    + shift.reshape(1, 1, 1, -1), 0.0)    # BN2 + ReLU (f32)
    # 2x2 / stride-2 max pool (reshape+reduce; tiny per-tile tensor, proven lowering).
    # TODO(synk): revisit with a lane-dense (HW-on-lanes) layout so the final store is unmasked.
    n, h, w, c = y.shape
    y = y.reshape(n, h, w // 2, 2, c).max(axis=3)
    y = y.reshape(n, h // 2, 2, w // 2, c).max(axis=2)
    o_ref[...] = y.astype(o_ref.dtype)


# --------------------------------- wrapper -----------------------------------

def _mosaic_params(sem):
    return pltpu.CompilerParams(dimension_semantics=sem,
                                vmem_limit_bytes=32 * 1024 * 1024)


def double_conv(x_nchw, params):
    """x_nchw: (N, Cin, H, W) f32 -> (N, Cout, (H-4)//2, (W-4)//2); PyTorch DoubleConv fwd."""
    n, cin, h, w = x_nchw.shape
    cout = params["w1"].shape[-1]
    h1, w1 = h - 2, w - 2                                  # after conv1 (k=3, s=1, p=0)
    h2, w2 = h1 - 2, w1 - 2                                # after conv2
    ho, wo = h2 // 2, w2 // 2                              # after 2x2 max pool
    count1 = float(n * h1 * w1)
    count2 = float(n * h2 * w2)
    fdt = jnp.float32

    x_nhwc = jnp.transpose(x_nchw, (0, 2, 3, 1)).astype(fdt)
    # HWIO -> (9*Cin, Cout), bf16 MXU operands (f32 accumulation in-kernel).
    w1f = params["w1"].reshape(9 * cin, cout).astype(jnp.bfloat16)
    w2f = params["w2"].reshape(9 * cout, cout).astype(jnp.bfloat16)
    g1, be1, g2, be2 = params["g1"], params["be1"], params["g2"], params["be2"]
    # params["b1"] / params["b2"] (conv biases) are intentionally NOT passed to the kernels:
    # training-mode BatchNorm subtracts the per-channel mean, so they cancel exactly.

    def full(shape):
        return pl.BlockSpec(shape, lambda i: (0,) * len(shape))

    # TODO(synk): for large H/W, add spatial (row) tiling with a 2-row halo on top of the
    # batch grid; BN-stat accumulation already supports it unchanged.

    # ---- stage 1: conv1 (single im2col MXU matmul) + BN1 sum/sumsq accumulation ----
    y1, s1, ss1 = pl.pallas_call(
        functools.partial(conv1_stats_kernel, hout=h1, wout=w1),
        grid=(n,),
        in_specs=[pl.BlockSpec((1, h, w, cin), lambda i: (i, 0, 0, 0)),
                  full((9 * cin, cout))],
        out_specs=(pl.BlockSpec((1, h1, w1, cout), lambda i: (i, 0, 0, 0)),
                   full((1, cout)), full((1, cout))),
        out_shape=(jax.ShapeDtypeStruct((n, h1, w1, cout), fdt),
                   jax.ShapeDtypeStruct((1, cout), fdt),
                   jax.ShapeDtypeStruct((1, cout), fdt)),
        compiler_params=_mosaic_params(("arbitrary",)),
        cost_estimate=pl.CostEstimate(
            flops=2 * n * h1 * w1 * 9 * cin * cout, transcendentals=0,
            bytes_accessed=4 * (n * h * w * cin + n * h1 * w1 * cout) + 2 * 9 * cin * cout),
    )(x_nhwc, w1f)

    # ---- stage 2: BN1 + ReLU + conv2 (single MXU matmul) + BN2 sum/sumsq accumulation ----
    y2, s2, ss2 = pl.pallas_call(
        functools.partial(bn1_conv2_stats_kernel, count1=count1, hout=h2, wout=w2),
        grid=(n,),
        in_specs=[pl.BlockSpec((1, h1, w1, cout), lambda i: (i, 0, 0, 0)),
                  full((9 * cout, cout)),
                  full((1, cout)), full((1, cout)),
                  full((1, cout)), full((1, cout))],
        out_specs=(pl.BlockSpec((1, h2, w2, cout), lambda i: (i, 0, 0, 0)),
                   full((1, cout)), full((1, cout))),
        out_shape=(jax.ShapeDtypeStruct((n, h2, w2, cout), fdt),
                   jax.ShapeDtypeStruct((1, cout), fdt),
                   jax.ShapeDtypeStruct((1, cout), fdt)),
        compiler_params=_mosaic_params(("arbitrary",)),
        cost_estimate=pl.CostEstimate(
            flops=2 * n * h2 * w2 * 9 * cout * cout, transcendentals=0,
            bytes_accessed=4 * (n * h1 * w1 * cout + n * h2 * w2 * cout) + 2 * 9 * cout * cout),
    )(y1, w2f, g1, be1, s1, ss1)

    # ---- stage 3: BN2 + ReLU + 2x2 max pool (batch axis is fully parallel here) ----
    out_nhwc = pl.pallas_call(
        functools.partial(bn2_pool_kernel, count2=count2),
        grid=(n,),
        in_specs=[pl.BlockSpec((1, h2, w2, cout), lambda i: (i, 0, 0, 0)),
                  full((1, cout)), full((1, cout)),
                  full((1, cout)), full((1, cout))],
        out_specs=pl.BlockSpec((1, ho, wo, cout), lambda i: (i, 0, 0, 0)),
        out_shape=jax.ShapeDtypeStruct((n, ho, wo, cout), x_nchw.dtype),
        compiler_params=_mosaic_params(("parallel",)),
        cost_estimate=pl.CostEstimate(
            flops=6 * n * h2 * w2 * cout, transcendentals=0,
            bytes_accessed=4 * (n * h2 * w2 * cout + n * ho * wo * cout)),
    )(y2, g2, be2, s2, ss2)

    return jnp.transpose(out_nhwc, (0, 3, 1, 2))


# ---------------------------- pure-JAX reference ------------------------------
# Faithful to the PyTorch module: Conv2d WITH bias, training-mode BatchNorm2d, ReLU,
# then MaxPool2d(2, 2). (The kernel drops the conv biases because BN cancels them.)

def double_conv_reference(x_nchw, params):
    x = jnp.transpose(x_nchw, (0, 2, 3, 1)).astype(jnp.float32)

    def conv(z, w_hwio, b):
        y = lax.conv_general_dilated(z, w_hwio, (1, 1), "VALID",
                                     dimension_numbers=("NHWC", "HWIO", "NHWC"))
        return y + b.reshape(1, 1, 1, -1)

    def bn_relu(y, g, be):
        mu = jnp.mean(y, axis=(0, 1, 2), keepdims=True)
        var = jnp.mean((y - mu) ** 2, axis=(0, 1, 2), keepdims=True)
        yhat = (y - mu) / jnp.sqrt(var + EPS)
        return jnp.maximum(yhat * g.reshape(1, 1, 1, -1) + be.reshape(1, 1, 1, -1), 0.0)

    y = bn_relu(conv(x, params["w1"], params["b1"]), params["g1"], params["be1"])
    y = bn_relu(conv(y, params["w2"], params["b2"]), params["g2"], params["be2"])
    n, h, w, c = y.shape
    y = y.reshape(n, h // 2, 2, w // 2, 2, c).max(axis=(2, 4))
    return jnp.transpose(y, (0, 3, 1, 2))


# ---------------------------------- params ------------------------------------

def init_params(key, cin, cout):
    ks = jax.random.split(key, 6)
    return {
        # conv weights in HWIO (equivalent to PyTorch's OIHW (Cout, Cin, 3, 3))
        "w1": 0.1 * jax.random.normal(ks[0], (3, 3, cin, cout), jnp.float32),
        "b1": 0.1 * jax.random.normal(ks[1], (1, cout), jnp.float32),
        "w2": 0.1 * jax.random.normal(ks[2], (3, 3, cout, cout), jnp.float32),
        "b2": 0.1 * jax.random.normal(ks[3], (1, cout), jnp.float32),
        # BatchNorm affine params (PyTorch init is ones/zeros; perturb BN1 to be nontrivial)
        "g1": 1.0 + 0.1 * jax.random.normal(ks[4], (1, cout), jnp.float32),
        "be1": 0.1 * jax.random.normal(ks[5], (1, cout), jnp.float32),
        "g2": jnp.ones((1, cout), jnp.float32),
        "be2": jnp.zeros((1, cout), jnp.float32),
    }


if __name__ == "__main__":
    key = jax.random.PRNGKey(0)
    k_x, k_p = jax.random.split(key)

    in_channels, out_channels = 4, 8
    x = jax.random.normal(k_x, (2, in_channels, 16, 16), jnp.float32)  # NCHW
    params = init_params(k_p, in_channels, out_channels)

    out = double_conv(x, params)
    out = jax.block_until_ready(out)

    ref = jax.block_until_ready(double_conv_reference(x, params))
    assert out.shape == (2, out_channels, 6, 6), out.shape
    assert jnp.allclose(out, ref, atol=5e-2, rtol=5e-2), float(jnp.max(jnp.abs(out - ref)))

    print("KERNEL_OK")
</pallas_src>

<mosaic_0001>
module attributes {stable_mosaic.version = 11 : i64} {
  func.func @conv1_stats_kernel(%arg0: i32, %arg1: memref<1x16x16x4xf32, #tpu.memory_space<vmem>>, %arg2: memref<36x8xbf16, #tpu.memory_space<vmem>>, %arg3: memref<1x14x14x8xf32, #tpu.memory_space<vmem>>, %arg4: memref<1x8xf32, #tpu.memory_space<vmem>>, %arg5: memref<1x8xf32, #tpu.memory_space<vmem>>) attributes {dimension_semantics = [#tpu.dimension_semantics<arbitrary>], iteration_bounds = array<i64: 2>, scalar_prefetch = 0 : i64, scratch_operands = 0 : i64, tpu.core_type = #tpu.core_type<tc>, window_params = [{transform_indices = @transform_0, window_bounds = array<i64: 1, 16, 16, 4>}, {pipeline_mode = #tpu.pipeline_mode<synchronous>, transform_indices = @transform_1, window_bounds = array<i64: 36, 8>}, {transform_indices = @transform_2, window_bounds = array<i64: 1, 14, 14, 8>}, {pipeline_mode = #tpu.pipeline_mode<synchronous>, transform_indices = @transform_3, window_bounds = array<i64: 1, 8>}, {pipeline_mode = #tpu.pipeline_mode<synchronous>, transform_indices = @transform_4, window_bounds = array<i64: 1, 8>}]} {
    %c0 = arith.constant 0 : index
    %c0_0 = arith.constant 0 : index
    %c0_1 = arith.constant 0 : index
    %c0_2 = arith.constant 0 : index
    %0 = vector.load %arg1[%c0, %c0_0, %c0_1, %c0_2] : memref<1x16x16x4xf32, #tpu.memory_space<vmem>>, vector<1x16x16x4xf32>
    %1 = vector.extract_strided_slice %0 {offsets = [0, 0, 0, 0], sizes = [1, 14, 14, 4], strides = [1, 1, 1, 1]} : vector<1x16x16x4xf32> to vector<1x14x14x4xf32>
    %2 = vector.extract_strided_slice %0 {offsets = [0, 0, 1, 0], sizes = [1, 14, 14, 4], strides = [1, 1, 1, 1]} : vector<1x16x16x4xf32> to vector<1x14x14x4xf32>
    %3 = vector.extract_strided_slice %0 {offsets = [0, 0, 2, 0], sizes = [1, 14, 14, 4], strides = [1, 1, 1, 1]} : vector<1x16x16x4xf32> to vector<1x14x14x4xf32>
    %4 = vector.extract_strided_slice %0 {offsets = [0, 1, 0, 0], sizes = [1, 14, 14, 4], strides = [1, 1, 1, 1]} : vector<1x16x16x4xf32> to vector<1x14x14x4xf32>
    %5 = vector.extract_strided_slice %0 {offsets = [0, 1, 1, 0], sizes = [1, 14, 14, 4], strides = [1, 1, 1, 1]} : vector<1x16x16x4xf32> to vector<1x14x14x4xf32>
    %6 = vector.extract_strided_slice %0 {offsets = [0, 1, 2, 0], sizes = [1, 14, 14, 4], strides = [1, 1, 1, 1]} : vector<1x16x16x4xf32> to vector<1x14x14x4xf32>
    %7 = vector.extract_strided_slice %0 {offsets = [0, 2, 0, 0], sizes = [1, 14, 14, 4], strides = [1, 1, 1, 1]} : vector<1x16x16x4xf32> to vector<1x14x14x4xf32>
    %8 = vector.extract_strided_slice %0 {offsets = [0, 2, 1, 0], sizes = [1, 14, 14, 4], strides = [1, 1, 1, 1]} : vector<1x16x16x4xf32> to vector<1x14x14x4xf32>
    %9 = vector.extract_strided_slice %0 {offsets = [0, 2, 2, 0], sizes = [1, 14, 14, 4], strides = [1, 1, 1, 1]} : vector<1x16x16x4xf32> to vector<1x14x14x4xf32>
    %10 = tpu.concatenate %1, %2, %3, %4, %5, %6, %7, %8, %9 in 3 : vector<1x14x14x4xf32>, vector<1x14x14x4xf32>, vector<1x14x14x4xf32>, vector<1x14x14x4xf32>, vector<1x14x14x4xf32>, vector<1x14x14x4xf32>, vector<1x14x14x4xf32>, vector<1x14x14x4xf32>, vector<1x14x14x4xf32> -> vector<1x14x14x36xf32>
    %11 = vector.shape_cast %10 : vector<1x14x14x36xf32> to vector<196x36xf32>
    %12 = arith.truncf %11 : vector<196x36xf32> to vector<196x36xbf16>
    %c0_3 = arith.constant 0 : index
    %c0_4 = arith.constant 0 : index
    %13 = vector.load %arg2[%c0_3, %c0_4] : memref<36x8xbf16, #tpu.memory_space<vmem>>, vector<36x8xbf16>
    %cst = arith.constant dense<0.000000e+00> : vector<196x8xf32>
    %14 = tpu.matmul %12, %13, %cst {dimension_numbers = #tpu.dot_dimension_numbers<[1], [0], [0], [1], [0, 0, 1, 1], [], []>} : vector<196x36xbf16>, vector<36x8xbf16>, vector<196x8xf32> -> vector<196x8xf32>
    %c0_i32 = arith.constant 0 : i32
    %15 = arith.cmpi eq, %arg0, %c0_i32 : i32
    %16 = arith.extui %15 : i1 to i32
    %c0_i32_5 = arith.constant 0 : i32
    %17 = arith.cmpi ne, %16, %c0_i32_5 : i32
    scf.if %17 {
      %cst_20 = arith.constant 0.000000e+00 : f32
      %31 = vector.broadcast %cst_20 : f32 to vector<1x8xf32>
      %c0_21 = arith.constant 0 : index
      %c0_22 = arith.constant 0 : index
      %32 = vector.load %arg4[%c0_21, %c0_22] : memref<1x8xf32, #tpu.memory_space<vmem>>, vector<1x8xf32>
      tpu.vector_store %arg4[%c0_21, %c0_22], %31 {strides = array<i32>} : memref<1x8xf32, #tpu.memory_space<vmem>>, vector<1x8xf32>,
      %cst_23 = arith.constant 0.000000e+00 : f32
      %33 = vector.broadcast %cst_23 : f32 to vector<1x8xf32>
      %c0_24 = arith.constant 0 : index
      %c0_25 = arith.constant 0 : index
      %34 = vector.load %arg5[%c0_24, %c0_25] : memref<1x8xf32, #tpu.memory_space<vmem>>, vector<1x8xf32>
      tpu.vector_store %arg5[%c0_24, %c0_25], %33 {strides = array<i32>} : memref<1x8xf32, #tpu.memory_space<vmem>>, vector<1x8xf32>,
    } else {
    }
    %c0_6 = arith.constant 0 : index
    %c0_7 = arith.constant 0 : index
    %18 = vector.load %arg4[%c0_6, %c0_7] : memref<1x8xf32, #tpu.memory_space<vmem>>, vector<1x8xf32>
    %cst_8 = arith.constant dense<0.000000e+00> : vector<8xf32>
    %19 = vector.multi_reduction <add>, %14, %cst_8 [0] : vector<196x8xf32> to vector<8xf32>
    %20 = vector.shape_cast %19 : vector<8xf32> to vector<1x8xf32>
    %21 = arith.addf %18, %20 : vector<1x8xf32>
    %c0_9 = arith.constant 0 : index
    %c0_10 = arith.constant 0 : index
    %22 = vector.load %arg4[%c0_9, %c0_10] : memref<1x8xf32, #tpu.memory_space<vmem>>, vector<1x8xf32>
    tpu.vector_store %arg4[%c0_9, %c0_10], %21 {strides = array<i32>} : memref<1x8xf32, #tpu.memory_space<vmem>>, vector<1x8xf32>,
    %c0_11 = arith.constant 0 : index
    %c0_12 = arith.constant 0 : index
    %23 = vector.load %arg5[%c0_11, %c0_12] : memref<1x8xf32, #tpu.memory_space<vmem>>, vector<1x8xf32>
    %24 = arith.mulf %14, %14 : vector<196x8xf32>
    %cst_13 = arith.constant dense<0.000000e+00> : vector<8xf32>
    %25 = vector.multi_reduction <add>, %24, %cst_13 [0] : vector<196x8xf32> to vector<8xf32>
    %26 = vector.shape_cast %25 : vector<8xf32> to vector<1x8xf32>
    %27 = arith.addf %23, %26 : vector<1x8xf32>
    %c0_14 = arith.constant 0 : index
    %c0_15 = arith.constant 0 : index
    %28 = vector.load %arg5[%c0_14, %c0_15] : memref<1x8xf32, #tpu.memory_space<vmem>>, vector<1x8xf32>
    tpu.vector_store %arg5[%c0_14, %c0_15], %27 {strides = array<i32>} : memref<1x8xf32, #tpu.memory_space<vmem>>, vector<1x8xf32>,
    %29 = vector.shape_cast %14 : vector<196x8xf32> to vector<1x14x14x8xf32>
    %c0_16 = arith.constant 0 : index
    %c0_17 = arith.constant 0 : index
    %c0_18 = arith.constant 0 : index
    %c0_19 = arith.constant 0 : index
    %30 = vector.load %arg3[%c0_16, %c0_17, %c0_18, %c0_19] : memref<1x14x14x8xf32, #tpu.memory_space<vmem>>, vector<1x14x14x8xf32>
    tpu.vector_store %arg3[%c0_16, %c0_17, %c0_18, %c0_19], %29 {strides = array<i32>} : memref<1x14x14x8xf32, #tpu.memory_space<vmem>>, vector<1x14x14x8xf32>,
    return
  }
  func.func @transform_0(%arg0: i32) -> (i32, i32, i32, i32) {
    %c0_i32 = arith.constant 0 : i32
    %c0_i32_0 = arith.constant 0 : i32
    %c0_i32_1 = arith.constant 0 : i32
    %c0_i32_2 = arith.constant 0 : i32
    return %arg0, %c0_i32, %c0_i32_0, %c0_i32_1 : i32, i32, i32, i32
  }
  func.func @transform_1(%arg0: i32) -> (i32, i32) {
    %c0_i32 = arith.constant 0 : i32
    %c0_i32_0 = arith.constant 0 : i32
    %c0_i32_1 = arith.constant 0 : i32
    return %c0_i32, %c0_i32_0 : i32, i32
  }
  func.func @transform_2(%arg0: i32) -> (i32, i32, i32, i32) {
    %c0_i32 = arith.constant 0 : i32
    %c0_i32_0 = arith.constant 0 : i32
    %c0_i32_1 = arith.constant 0 : i32
    %c0_i32_2 = arith.constant 0 : i32
    return %arg0, %c0_i32, %c0_i32_0, %c0_i32_1 : i32, i32, i32, i32
  }
  func.func @transform_3(%arg0: i32) -> (i32, i32) {
    %c0_i32 = arith.constant 0 : i32
    %c0_i32_0 = arith.constant 0 : i32
    %c0_i32_1 = arith.constant 0 : i32
    return %c0_i32, %c0_i32_0 : i32, i32
  }
  func.func @transform_4(%arg0: i32) -> (i32, i32) {
    %c0_i32 = arith.constant 0 : i32
    %c0_i32_0 = arith.constant 0 : i32
    %c0_i32_1 = arith.constant 0 : i32
    return %c0_i32, %c0_i32_0 : i32, i32
  }
}

</mosaic_0001>

<llo_original>
// kernel: tpu_custom_call.1
$region0: #{tpu_custom_call.1}
  #allocation0 [shape = 'u32[]', space=smem, size = 0x4, offset = 0x4, fixed_abs, tag = 'smem constant byte address 0x4 - core index']
  #allocation1 [shape = 'u32[144,128]{1,0:T(1,128)}', space=vmem, size = 0x12000, scoped, tag = 'internal scratch']
  %s0 = inlined_call_operand.vmem [shape: f32[2,16,16,4], index: 0, kind: input, shape index: {}]
  %s1 = inlined_call_operand.vmem [shape: bf16[36,8], index: 1, kind: input, shape index: {}]
  %s2 = inlined_call_operand.vmem [shape: f32[2,14,14,8], index: 2, kind: output, shape index: {0}]
  %s3 = inlined_call_operand.hbm [shape: f32[1,8], index: 3, kind: output, shape index: {1}]
  %s4 = inlined_call_operand.hbm [shape: f32[1,8], index: 4, kind: output, shape index: {2}]
  %5 = xla_tuple %s2, %s3, %s4
  %s6 = sld [smem:[#allocation0]]
  $region61: #{tpu_custom_call.1} parent=0
    _
  %s8 = ssub.s32 1, %s6
  %s9 = scalar_select 0, %s8, %s6
  $region1: #{tpu_custom_call.1} parent=0
    #allocation2 [shape = 'u8[512]{0}', space=vmem, size = 0x400, scoped, tag = 'output window, operand 1, single buffered']
    #allocation3 [shape = 's32[2]{0}', space=sflag, size = 0x8, scoped, tag = 'scoped memory for tpu_custom_call.1']
    #allocation4 [shape = 'u8[512]{0}', space=vmem, size = 0x400, scoped, tag = 'output window, operand 2, single buffered']
    #allocation5 [shape = 's32[1]{0}', space=sflag, size = 0x4, scoped, tag = 'scoped memory for tpu_custom_call.1']
    %10 = vsyncpa [#allocation3], 0
    %11 = vsyncpa [#allocation5], 0
    loop: start=0, step=1, limit=4
    $region2: #{tpu_custom_call.1} parent=1 // loop_pre_header
      _
    $region3: #{tpu_custom_call.1} parent=1 // loop_header
      %s13 = sphi 0, %s17
      %p14 = scmp.ge.s32.totalorder %s13, 4
      %s23 = sphi 0, %s25
      %s26 = sphi 0, %s23
      %s27 = sphi 0, %s26
      %s43 = sphi 0, %s27
      %s47 = sphi 0, %s47
      %s49 = sphi 0, %s47
      %s50 = sphi 0, %s49
      %s64 = sphi 0, %s50
      %s70 = sphi 0, %s72
      %s73 = sphi 0, %s70
      %s74 = sphi 0, %s73
      %s90 = sphi 0, %s74
      %s94 = sphi 0, %s94
      %s96 = sphi 0, %s94
      %s97 = sphi 0, %s96
      %s111 = sphi 0, %s97
      %s115 = sphi 0, %s115
      %s117 = sphi 0, %s115
      %s118 = sphi 0, %s117
      %s132 = sphi 0, %s118
    $region4: #{tpu_custom_call.1} parent=1 // loop_header_branch
      %16 = sbr.rel (%p14) target = $region8
    $region5: #{tpu_custom_call.1} parent=1 // loop_body
      %s18 = ssub.s32 %s13, 1
      %s19 = ssub.s32 %s13, 2
      %s20 = sadd.s32 %s13, 1
      %s21 = ssub.s32 %s13, %s20
      %p22 = scmp.eq.s32.totalorder %s21, 0
      %s24 = sadd.s32 %s23, 1
      %s25 = scalar_select %p22, %s23, %s24
      %p28 = pneg %p22
      %p29 = scmp.eq.s32.totalorder %s13, 1
      %p30 = por %p28, %p29
      %p31 = scmp.ne.s32.totalorder %s23, %s26
      %p32 = scmp.eq.s32.totalorder %s13, 0
      %p33 = por %p31, %p32
      %p34 = scmp.ne.s32.totalorder %s23, %s26
      %p35 = scmp.eq.s32.totalorder %s18, 1
      %p36 = por %p34, %p35
      %p37 = scmp.ne.s32.totalorder %s26, %s27
      %p38 = scmp.eq.s32.totalorder %s18, 0
      %p39 = por %p37, %p38
      %p40 = scmp.ne.s32.totalorder %s26, %s27
      %p41 = scmp.eq.s32.totalorder %s19, 1
      %p42 = por %p40, %p41
      %p44 = scmp.ne.s32.totalorder %s27, %s43
      %p45 = scmp.eq.s32.totalorder %s19, 0
      %p46 = por %p44, %p45
      %s48 = sadd.s32 %s47, 1
      %p51 = scmp.eq.s32.totalorder %s13, 1
      %p52 = scmp.ne.s32.totalorder %s47, %s49
      %p53 = scmp.eq.s32.totalorder %s13, 0
      %p54 = por %p52, %p53
      %p55 = scmp.ne.s32.totalorder %s47, %s49
      %p56 = scmp.eq.s32.totalorder %s18, 1
      %p57 = por %p55, %p56
      %p58 = scmp.ne.s32.totalorder %s49, %s50
      %p59 = scmp.eq.s32.totalorder %s18, 0
      %p60 = por %p58, %p59
      %p61 = scmp.ne.s32.totalorder %s49, %s50
      %p62 = scmp.eq.s32.totalorder %s19, 1
      %p63 = por %p61, %p62
      %p65 = scmp.ne.s32.totalorder %s50, %s64
      %p66 = scmp.eq.s32.totalorder %s19, 0
      %p67 = por %p65, %p66
      %s68 = ssub.s32 %s13, %s20
      %p69 = scmp.eq.s32.totalorder %s68, 0
      %s71 = sadd.s32 %s70, 1
      %s72 = scalar_select %p69, %s70, %s71
      %p75 = pneg %p69
      %p76 = scmp.eq.s32.totalorder %s13, 1
      %p77 = por %p75, %p76
      %p78 = scmp.ne.s32.totalorder %s70, %s73
      %p79 = scmp.eq.s32.totalorder %s13, 0
      %p80 = por %p78, %p79
      %p81 = scmp.ne.s32.totalorder %s70, %s73
      %p82 = scmp.eq.s32.totalorder %s18, 1
      %p83 = por %p81, %p82
      %p84 = scmp.ne.s32.totalorder %s73, %s74
      %p85 = scmp.eq.s32.totalorder %s18, 0
      %p86 = por %p84, %p85
      %p87 = scmp.ne.s32.totalorder %s73, %s74
      %p88 = scmp.eq.s32.totalorder %s19, 1
      %p89 = por %p87, %p88
      %p91 = scmp.ne.s32.totalorder %s74, %s90
      %p92 = scmp.eq.s32.totalorder %s19, 0
      %p93 = por %p91, %p92
      %s95 = sadd.s32 %s94, 1
      %p98 = scmp.eq.s32.totalorder %s13, 1
      %p99 = scmp.ne.s32.totalorder %s94, %s96
      %p100 = scmp.eq.s32.totalorder %s13, 0
      %p101 = por %p99, %p100
      %p102 = scmp.ne.s32.totalorder %s94, %s96
      %p103 = scmp.eq.s32.totalorder %s18, 1
      %p104 = por %p102, %p103
      %p105 = scmp.ne.s32.totalorder %s96, %s97
      %p106 = scmp.eq.s32.totalorder %s18, 0
      %p107 = por %p105, %p106
      %p108 = scmp.ne.s32.totalorder %s96, %s97
      %p109 = scmp.eq.s32.totalorder %s19, 1
      %p110 = por %p108, %p109
      %p112 = scmp.ne.s32.totalorder %s97, %s111
      %p113 = scmp.eq.s32.totalorder %s19, 0
      %p114 = por %p112, %p113
      %s116 = sadd.s32 %s115, 1
      %p119 = scmp.eq.s32.totalorder %s13, 1
      %p120 = scmp.ne.s32.totalorder %s115, %s117
      %p121 = scmp.eq.s32.totalorder %s13, 0
      %p122 = por %p120, %p121
      %p123 = scmp.ne.s32.totalorder %s115, %s117
      %p124 = scmp.eq.s32.totalorder %s18, 1
      %p125 = por %p123, %p124
      %p126 = scmp.ne.s32.totalorder %s117, %s118
      %p127 = scmp.eq.s32.totalorder %s18, 0
      %p128 = por %p126, %p127
      %p129 = scmp.ne.s32.totalorder %s117, %s118
      %p130 = scmp.eq.s32.totalorder %s19, 1
      %p131 = por %p129, %p130
      %p133 = scmp.ne.s32.totalorder %s118, %s132
      %p134 = scmp.eq.s32.totalorder %s19, 0
      %p135 = por %p133, %p134
      %p136 = scmp.le.s32.totalorder 1, %s13
      %p137 = scmp.lt.s32.totalorder %s13, 3
      %p138 = pnand %p136, %p137
      %p139 = pneg %p138
      // Predicated region
      $region9: #{tpu_custom_call.1} parent=5 // pred_check
        _
      $region10: #{tpu_custom_call.1} parent=5 // pred_check_branch
        %141 = sbr.rel (%p138) target = $region12
      $region11: #{tpu_custom_call.1} parent=5 // pred_region
        %s142 = ssub.s32 %s13, 1
        // Predicated region
        $region13: #{tpu_custom_call.1} parent=11 // pred_check
          %p143 = pneg %p60
        $region14: #{tpu_custom_call.1} parent=11 // pred_check_branch
          %145 = sbr.rel (%p143) target = $region16
        $region15: #{tpu_custom_call.1} parent=11 // pred_region
          _
        $region16: #{tpu_custom_call.1} parent=11 // pred_fallthru
          _
      $region12: #{tpu_custom_call.1} parent=5 // pred_fallthru
        _
      %p146 = scmp.lt.s32.totalorder %s13, 2
      // Predicated region
      $region17: #{tpu_custom_call.1} parent=5 // pred_check
        %p147 = pneg %p146
      $region18: #{tpu_custom_call.1} parent=5 // pred_check_branch
        %149 = sbr.rel (%p147) target = $region20
      $region19: #{tpu_custom_call.1} parent=5 // pred_region
        // Predicated region
        $region21: #{tpu_custom_call.1} parent=19 // pred_check
          %p150 = pneg %p33
        $region22: #{tpu_custom_call.1} parent=19 // pred_check_branch
          %152 = sbr.rel (%p150) target = $region24
        $region23: #{tpu_custom_call.1} parent=19 // pred_region
          %p153 = scmp.lt.s32.totalorder %s13, 1
          %s154 = scalar_select %p153, %s13, 1
          %s155 = smul.addr %s154, 32
          %s156 = smul.addr %s155, 8
          %s157 = scalar_lea.vmem %s0, %s156
        $region24: #{tpu_custom_call.1} parent=19 // pred_fallthru
          _
      $region20: #{tpu_custom_call.1} parent=5 // pred_fallthru
        _
      %p158 = scmp.le.s32.totalorder 1, %s13
      %p159 = scmp.lt.s32.totalorder %s13, 3
      %p160 = pnand %p158, %p159
      %p161 = pneg %p160
      // Predicated region
      $region25: #{tpu_custom_call.1} parent=5 // pred_check
        _
      $region26: #{tpu_custom_call.1} parent=5 // pred_check_branch
        %163 = sbr.rel (%p160) target = $region28
      $region27: #{tpu_custom_call.1} parent=5 // pred_region
        %s164 = ssub.s32 %s13, 1
        %p165 = scmp.lt.s32.totalorder %s18, 1
        %s166 = scalar_select %p165, %s18, 1
        %s167 = smul.addr %s166, 32
        %s168 = smul.addr %s167, 8
        %s169 = scalar_lea.vmem %s0, %s168
        %p170 = pneg %p39
        %p171 = pneg %p36
        %p172 = pneg %p60
        %p173 = pneg %p57
        %p174 = pneg %p86
        %p175 = pneg %p83
        %p176 = scmp.lt.s32.totalorder %s18, 1
        %s177 = scalar_select %p176, %s18, 1
        %s178 = smul.addr %s177, 28
        %s179 = smul.addr %s178, 8
        %s180 = scalar_lea.vmem %s2, %s179
        %p181 = pneg %p107
        %p182 = pneg %p104
        %p183 = pneg %p128
        %p184 = pneg %p125
        %p185 = scmp.lt.s32.totalorder %s18, 1
        %s186 = scalar_select %p185, %s18, 1
        %s187 = smul.addr %s186, 32
        %s188 = smul.addr %s187, 8
        %s189 = scalar_lea.vmem %s0, %s188
        %p190 = scmp.lt.s32.totalorder %s18, 1
        %s191 = scalar_select %p190, %s18, 1
        %s192 = smul.addr %s191, 28
        %s193 = smul.addr %s192, 8
        %s194 = scalar_lea.vmem %s2, %s193
        %v196 = vld [vmem:[%s189] sm:$0xff]
        %v197 = vld [vmem:[%s189 + $0x8] sm:$0xff]
        %v198 = vld [vmem:[%s189 + $0x10] sm:$0xff]
        %v199 = vld [vmem:[%s189 + $0x18] sm:$0xff]
        %v200 = vld [vmem:[%s189 + $0x20] sm:$0xff]
        %v201 = vld [vmem:[%s189 + $0x28] sm:$0xff]
        %v202 = vld [vmem:[%s189 + $0x30] sm:$0xff]
        %v203 = vld [vmem:[%s189 + $0x38] sm:$0xff]
        %v204 = vld [vmem:[%s189 + $0x40] sm:$0xff]
        %v205 = vld [vmem:[%s189 + $0x48] sm:$0xff]
        %v206 = vld [vmem:[%s189 + $0x50] sm:$0xff]
        %v207 = vld [vmem:[%s189 + $0x58] sm:$0xff]
        %v208 = vld [vmem:[%s189 + $0x60] sm:$0xff]
        %v209 = vld [vmem:[%s189 + $0x68] sm:$0xff]
        %v210 = vld [vmem:[%s189 + $0x70] sm:$0xff]
        %v211 = vld [vmem:[%s189 + $0x78] sm:$0xff]
        %v212 = vld [vmem:[%s189 + $0x80] sm:$0xff]
        %v213 = vld [vmem:[%s189 + $0x88] sm:$0xff]
        %v214 = vld [vmem:[%s189 + $0x90] sm:$0xff]
        %v215 = vld [vmem:[%s189 + $0x98] sm:$0xff]
        %v216 = vld [vmem:[%s189 + $0xa0] sm:$0xff]
        %v217 = vld [vmem:[%s189 + $0xa8] sm:$0xff]
        %v218 = vld [vmem:[%s189 + $0xb0] sm:$0xff]
        %v219 = vld [vmem:[%s189 + $0xb8] sm:$0xff]
        %v220 = vld [vmem:[%s189 + $0xc0] sm:$0xff]
        %v221 = vld [vmem:[%s189 + $0xc8] sm:$0xff]
        %v222 = vld [vmem:[%s189 + $0xd0] sm:$0xff]
        %v223 = vld [vmem:[%s189 + $0xd8] sm:$0xff]
        %v224 = vld [vmem:[%s189 + $0xe0] sm:$0xff]
        %v225 = vld [vmem:[%s189 + $0xe8] sm:$0xff]
        %v226 = vld [vmem:[%s189 + $0xf0] sm:$0xff]
        %v227 = vld [vmem:[%s189 + $0xf8] sm:$0xff]
        %vm256 = vcmask 1046528
        %v257 = vrot.slane %v196, 1
        %v258 = vrot.slane %v197, 1
        %v259 = vsel %vm256, %v257, %v258
        %v260 = vrot.slane %v198, 1
        %v261 = vrot.slane %v199, 1
        %v262 = vsel %vm256, %v260, %v261
        %v263 = vrot.slane %v200, 1
        %v264 = vrot.slane %v201, 1
        %v265 = vsel %vm256, %v263, %v264
        %v266 = vrot.slane %v202, 1
        %v267 = vrot.slane %v203, 1
        %v268 = vsel %vm256, %v266, %v267
        %v269 = vrot.slane %v204, 1
        %v270 = vrot.slane %v205, 1
        %v271 = vsel %vm256, %v269, %v270
        %v272 = vrot.slane %v206, 1
        %v273 = vrot.slane %v207, 1
        %v274 = vsel %vm256, %v272, %v273
        %v275 = vrot.slane %v208, 1
        %v276 = vrot.slane %v209, 1
        %v277 = vsel %vm256, %v275, %v276
        %v278 = vrot.slane %v210, 1
        %v279 = vrot.slane %v211, 1
        %v280 = vsel %vm256, %v278, %v279
        %v281 = vrot.slane %v212, 1
        %v282 = vrot.slane %v213, 1
        %v283 = vsel %vm256, %v281, %v282
        %v284 = vrot.slane %v214, 1
        %v285 = vrot.slane %v215, 1
        %v286 = vsel %vm256, %v284, %v285
        %v287 = vrot.slane %v216, 1
        %v288 = vrot.slane %v217, 1
        %v289 = vsel %vm256, %v287, %v288
        %v290 = vrot.slane %v218, 1
        %v291 = vrot.slane %v219, 1
        %v292 = vsel %vm256, %v290, %v291
        %v293 = vrot.slane %v220, 1
        %v294 = vrot.slane %v221, 1
        %v295 = vsel %vm256, %v293, %v294
        %v296 = vrot.slane %v222, 1
        %v297 = vrot.slane %v223, 1
        %v298 = vsel %vm256, %v296, %v297
        %299 = vrot.lane.b32.xlu0 %v259, 4
        %v300 = vpop.permute.xlu0 %299
        %301 = vrot.lane.b32.xlu0 %v258, 4
        %v302 = vpop.permute.xlu0 %301
        %303 = vrot.lane.b32.xlu0 %v262, 4
        %v304 = vpop.permute.xlu0 %303
        %305 = vrot.lane.b32.xlu0 %v261, 4
        %v306 = vpop.permute.xlu0 %305
        %307 = vrot.lane.b32.xlu0 %v265, 4
        %v308 = vpop.permute.xlu0 %307
        %309 = vrot.lane.b32.xlu0 %v264, 4
        %v310 = vpop.permute.xlu0 %309
        %311 = vrot.lane.b32.xlu0 %v268, 4
        %v312 = vpop.permute.xlu0 %311
        %313 = vrot.lane.b32.xlu0 %v267, 4
        %v314 = vpop.permute.xlu0 %313
        %315 = vrot.lane.b32.xlu0 %v271, 4
        %v316 = vpop.permute.xlu0 %315
        %317 = vrot.lane.b32.xlu0 %v270, 4
        %v318 = vpop.permute.xlu0 %317
        %319 = vrot.lane.b32.xlu0 %v274, 4
        %v320 = vpop.permute.xlu0 %319
        %321 = vrot.lane.b32.xlu0 %v273, 4
        %v322 = vpop.permute.xlu0 %321
        %323 = vrot.lane.b32.xlu0 %v277, 4
        %v324 = vpop.permute.xlu0 %323
        %325 = vrot.lane.b32.xlu0 %v276, 4
        %v326 = vpop.permute.xlu0 %325
        %327 = vrot.lane.b32.xlu0 %v280, 4
        %v328 = vpop.permute.xlu0 %327
        %329 = vrot.lane.b32.xlu0 %v279, 4
        %v330 = vpop.permute.xlu0 %329
        %331 = vrot.lane.b32.xlu0 %v283, 4
        %v332 = vpop.permute.xlu0 %331
        %333 = vrot.lane.b32.xlu0 %v282, 4
        %v334 = vpop.permute.xlu0 %333
        %335 = vrot.lane.b32.xlu0 %v286, 4
        %v336 = vpop.permute.xlu0 %335
        %337 = vrot.lane.b32.xlu0 %v285, 4
        %v338 = vpop.permute.xlu0 %337
        %339 = vrot.lane.b32.xlu0 %v289, 4
        %v340 = vpop.permute.xlu0 %339
        %341 = vrot.lane.b32.xlu0 %v288, 4
        %v342 = vpop.permute.xlu0 %341
        %343 = vrot.lane.b32.xlu0 %v292, 4
        %v344 = vpop.permute.xlu0 %343
        %345 = vrot.lane.b32.xlu0 %v291, 4
        %v346 = vpop.permute.xlu0 %345
        %347 = vrot.lane.b32.xlu0 %v295, 4
        %v348 = vpop.permute.xlu0 %347
        %349 = vrot.lane.b32.xlu0 %v294, 4
        %v350 = vpop.permute.xlu0 %349
        %351 = vrot.lane.b32.xlu0 %v298, 4
        %v352 = vpop.permute.xlu0 %351
        %353 = vrot.lane.b32.xlu0 %v297, 4
        %v354 = vpop.permute.xlu0 %353
        %vm383 = vcmask 1045504
        %v384 = vrot.slane %v196, 2
        %v385 = vrot.slane %v197, 2
        %v386 = vsel %vm383, %v384, %v385
        %v387 = vrot.slane %v198, 2
        %v388 = vrot.slane %v199, 2
        %v389 = vsel %vm383, %v387, %v388
        %v390 = vrot.slane %v200, 2
        %v391 = vrot.slane %v201, 2
        %v392 = vsel %vm383, %v390, %v391
        %v393 = vrot.slane %v202, 2
        %v394 = vrot.slane %v203, 2
        %v395 = vsel %vm383, %v393, %v394
        %v396 = vrot.slane %v204, 2
        %v397 = vrot.slane %v205, 2
        %v398 = vsel %vm383, %v396, %v397
        %v399 = vrot.slane %v206, 2
        %v400 = vrot.slane %v207, 2
        %v401 = vsel %vm383, %v399, %v400
        %v402 = vrot.slane %v208, 2
        %v403 = vrot.slane %v209, 2
        %v404 = vsel %vm383, %v402, %v403
        %v405 = vrot.slane %v210, 2
        %v406 = vrot.slane %v211, 2
        %v407 = vsel %vm383, %v405, %v406
        %v408 = vrot.slane %v212, 2
        %v409 = vrot.slane %v213, 2
        %v410 = vsel %vm383, %v408, %v409
        %v411 = vrot.slane %v214, 2
        %v412 = vrot.slane %v215, 2
        %v413 = vsel %vm383, %v411, %v412
        %v414 = vrot.slane %v216, 2
        %v415 = vrot.slane %v217, 2
        %v416 = vsel %vm383, %v414, %v415
        %v417 = vrot.slane %v218, 2
        %v418 = vrot.slane %v219, 2
        %v419 = vsel %vm383, %v417, %v418
        %v420 = vrot.slane %v220, 2
        %v421 = vrot.slane %v221, 2
        %v422 = vsel %vm383, %v420, %v421
        %v423 = vrot.slane %v222, 2
        %v424 = vrot.slane %v223, 2
        %v425 = vsel %vm383, %v423, %v424
        %426 = vrot.lane.b32.xlu0 %v386, 8
        %v427 = vpop.permute.xlu0 %426
        %428 = vrot.lane.b32.xlu0 %v385, 8
        %v429 = vpop.permute.xlu0 %428
        %430 = vrot.lane.b32.xlu0 %v389, 8
        %v431 = vpop.permute.xlu0 %430
        %432 = vrot.lane.b32.xlu0 %v388, 8
        %v433 = vpop.permute.xlu0 %432
        %434 = vrot.lane.b32.xlu0 %v392, 8
        %v435 = vpop.permute.xlu0 %434
        %436 = vrot.lane.b32.xlu0 %v391, 8
        %v437 = vpop.permute.xlu0 %436
        %438 = vrot.lane.b32.xlu0 %v395, 8
        %v439 = vpop.permute.xlu0 %438
        %440 = vrot.lane.b32.xlu0 %v394, 8
        %v441 = vpop.permute.xlu0 %440
        %442 = vrot.lane.b32.xlu0 %v398, 8
        %v443 = vpop.permute.xlu0 %442
        %444 = vrot.lane.b32.xlu0 %v397, 8
        %v445 = vpop.permute.xlu0 %444
        %446 = vrot.lane.b32.xlu0 %v401, 8
        %v447 = vpop.permute.xlu0 %446
        %448 = vrot.lane.b32.xlu0 %v400, 8
        %v449 = vpop.permute.xlu0 %448
        %450 = vrot.lane.b32.xlu0 %v404, 8
        %v451 = vpop.permute.xlu0 %450
        %452 = vrot.lane.b32.xlu0 %v403, 8
        %v453 = vpop.permute.xlu0 %452
        %454 = vrot.lane.b32.xlu0 %v407, 8
        %v455 = vpop.permute.xlu0 %454
        %456 = vrot.lane.b32.xlu0 %v406, 8
        %v457 = vpop.permute.xlu0 %456
        %458 = vrot.lane.b32.xlu0 %v410, 8
        %v459 = vpop.permute.xlu0 %458
        %460 = vrot.lane.b32.xlu0 %v409, 8
        %v461 = vpop.permute.xlu0 %460
        %462 = vrot.lane.b32.xlu0 %v413, 8
        %v463 = vpop.permute.xlu0 %462
        %464 = vrot.lane.b32.xlu0 %v412, 8
        %v465 = vpop.permute.xlu0 %464
        %466 = vrot.lane.b32.xlu0 %v416, 8
        %v467 = vpop.permute.xlu0 %466
        %468 = vrot.lane.b32.xlu0 %v415, 8
        %v469 = vpop.permute.xlu0 %468
        %470 = vrot.lane.b32.xlu0 %v419, 8
        %v471 = vpop.permute.xlu0 %470
        %472 = vrot.lane.b32.xlu0 %v418, 8
        %v473 = vpop.permute.xlu0 %472
        %474 = vrot.lane.b32.xlu0 %v422, 8
        %v475 = vpop.permute.xlu0 %474
        %476 = vrot.lane.b32.xlu0 %v421, 8
        %v477 = vpop.permute.xlu0 %476
        %478 = vrot.lane.b32.xlu0 %v425, 8
        %v479 = vpop.permute.xlu0 %478
        %480 = vrot.lane.b32.xlu0 %v424, 8
        %v481 = vpop.permute.xlu0 %480
        %512 = vrot.lane.b32.xlu0 %v198, 12
        %v513 = vpop.permute.xlu0 %512
        %514 = vrot.lane.b32.xlu0 %v199, 12
        %v515 = vpop.permute.xlu0 %514
        %516 = vrot.lane.b32.xlu0 %v200, 12
        %v517 = vpop.permute.xlu0 %516
        %518 = vrot.lane.b32.xlu0 %v201, 12
        %v519 = vpop.permute.xlu0 %518
        %520 = vrot.lane.b32.xlu0 %v202, 12
        %v521 = vpop.permute.xlu0 %520
        %522 = vrot.lane.b32.xlu0 %v203, 12
        %v523 = vpop.permute.xlu0 %522
        %524 = vrot.lane.b32.xlu0 %v204, 12
        %v525 = vpop.permute.xlu0 %524
        %526 = vrot.lane.b32.xlu0 %v205, 12
        %v527 = vpop.permute.xlu0 %526
        %528 = vrot.lane.b32.xlu0 %v206, 12
        %v529 = vpop.permute.xlu0 %528
        %530 = vrot.lane.b32.xlu0 %v207, 12
        %v531 = vpop.permute.xlu0 %530
        %532 = vrot.lane.b32.xlu0 %v208, 12
        %v533 = vpop.permute.xlu0 %532
        %534 = vrot.lane.b32.xlu0 %v209, 12
        %v535 = vpop.permute.xlu0 %534
        %536 = vrot.lane.b32.xlu0 %v210, 12
        %v537 = vpop.permute.xlu0 %536
        %538 = vrot.lane.b32.xlu0 %v211, 12
        %v539 = vpop.permute.xlu0 %538
        %540 = vrot.lane.b32.xlu0 %v212, 12
        %v541 = vpop.permute.xlu0 %540
        %542 = vrot.lane.b32.xlu0 %v213, 12
        %v543 = vpop.permute.xlu0 %542
        %544 = vrot.lane.b32.xlu0 %v214, 12
        %v545 = vpop.permute.xlu0 %544
        %546 = vrot.lane.b32.xlu0 %v215, 12
        %v547 = vpop.permute.xlu0 %546
        %548 = vrot.lane.b32.xlu0 %v216, 12
        %v549 = vpop.permute.xlu0 %548
        %550 = vrot.lane.b32.xlu0 %v217, 12
        %v551 = vpop.permute.xlu0 %550
        %552 = vrot.lane.b32.xlu0 %v218, 12
        %v553 = vpop.permute.xlu0 %552
        %554 = vrot.lane.b32.xlu0 %v219, 12
        %v555 = vpop.permute.xlu0 %554
        %556 = vrot.lane.b32.xlu0 %v220, 12
        %v557 = vpop.permute.xlu0 %556
        %558 = vrot.lane.b32.xlu0 %v221, 12
        %v559 = vpop.permute.xlu0 %558
        %560 = vrot.lane.b32.xlu0 %v222, 12
        %v561 = vpop.permute.xlu0 %560
        %562 = vrot.lane.b32.xlu0 %v223, 12
        %v563 = vpop.permute.xlu0 %562
        %564 = vrot.lane.b32.xlu0 %v224, 12
        %v565 = vpop.permute.xlu0 %564
        %566 = vrot.lane.b32.xlu0 %v225, 12
        %v567 = vpop.permute.xlu0 %566
        %v596 = vrot.slane %v224, 1
        %v597 = vrot.slane %v225, 1
        %v598 = vsel %vm256, %v596, %v597
        %599 = vrot.lane.b32.xlu0 %v262, 16
        %v600 = vpop.permute.xlu0 %599
        %601 = vrot.lane.b32.xlu0 %v261, 16
        %v602 = vpop.permute.xlu0 %601
        %603 = vrot.lane.b32.xlu0 %v265, 16
        %v604 = vpop.permute.xlu0 %603
        %605 = vrot.lane.b32.xlu0 %v264, 16
        %v606 = vpop.permute.xlu0 %605
        %607 = vrot.lane.b32.xlu0 %v268, 16
        %v608 = vpop.permute.xlu0 %607
        %609 = vrot.lane.b32.xlu0 %v267, 16
        %v610 = vpop.permute.xlu0 %609
        %611 = vrot.lane.b32.xlu0 %v271, 16
        %v612 = vpop.permute.xlu0 %611
        %613 = vrot.lane.b32.xlu0 %v270, 16
        %v614 = vpop.permute.xlu0 %613
        %615 = vrot.lane.b32.xlu0 %v274, 16
        %v616 = vpop.permute.xlu0 %615
        %617 = vrot.lane.b32.xlu0 %v273, 16
        %v618 = vpop.permute.xlu0 %617
        %619 = vrot.lane.b32.xlu0 %v277, 16
        %v620 = vpop.permute.xlu0 %619
        %621 = vrot.lane.b32.xlu0 %v276, 16
        %v622 = vpop.permute.xlu0 %621
        %623 = vrot.lane.b32.xlu0 %v280, 16
        %v624 = vpop.permute.xlu0 %623
        %625 = vrot.lane.b32.xlu0 %v279, 16
        %v626 = vpop.permute.xlu0 %625
        %627 = vrot.lane.b32.xlu0 %v283, 16
        %v628 = vpop.permute.xlu0 %627
        %629 = vrot.lane.b32.xlu0 %v282, 16
        %v630 = vpop.permute.xlu0 %629
        %631 = vrot.lane.b32.xlu0 %v286, 16
        %v632 = vpop.permute.xlu0 %631
        %633 = vrot.lane.b32.xlu0 %v285, 16
        %v634 = vpop.permute.xlu0 %633
        %635 = vrot.lane.b32.xlu0 %v289, 16
        %v636 = vpop.permute.xlu0 %635
        %637 = vrot.lane.b32.xlu0 %v288, 16
        %v638 = vpop.permute.xlu0 %637
        %639 = vrot.lane.b32.xlu0 %v292, 16
        %v640 = vpop.permute.xlu0 %639
        %641 = vrot.lane.b32.xlu0 %v291, 16
        %v642 = vpop.permute.xlu0 %641
        %643 = vrot.lane.b32.xlu0 %v295, 16
        %v644 = vpop.permute.xlu0 %643
        %645 = vrot.lane.b32.xlu0 %v294, 16
        %v646 = vpop.permute.xlu0 %645
        %647 = vrot.lane.b32.xlu0 %v298, 16
        %v648 = vpop.permute.xlu0 %647
        %649 = vrot.lane.b32.xlu0 %v297, 16
        %v650 = vpop.permute.xlu0 %649
        %651 = vrot.lane.b32.xlu0 %v598, 16
        %v652 = vpop.permute.xlu0 %651
        %653 = vrot.lane.b32.xlu0 %v597, 16
        %v654 = vpop.permute.xlu0 %653
        %v683 = vrot.slane %v224, 2
        %v684 = vrot.slane %v225, 2
        %v685 = vsel %vm383, %v683, %v684
        %686 = vrot.lane.b32.xlu0 %v389, 20
        %v687 = vpop.permute.xlu0 %686
        %688 = vrot.lane.b32.xlu0 %v388, 20
        %v689 = vpop.permute.xlu0 %688
        %690 = vrot.lane.b32.xlu0 %v392, 20
        %v691 = vpop.permute.xlu0 %690
        %692 = vrot.lane.b32.xlu0 %v391, 20
        %v693 = vpop.permute.xlu0 %692
        %694 = vrot.lane.b32.xlu0 %v395, 20
        %v695 = vpop.permute.xlu0 %694
        %696 = vrot.lane.b32.xlu0 %v394, 20
        %v697 = vpop.permute.xlu0 %696
        %698 = vrot.lane.b32.xlu0 %v398, 20
        %v699 = vpop.permute.xlu0 %698
        %700 = vrot.lane.b32.xlu0 %v397, 20
        %v701 = vpop.permute.xlu0 %700
        %702 = vrot.lane.b32.xlu0 %v401, 20
        %v703 = vpop.permute.xlu0 %702
        %704 = vrot.lane.b32.xlu0 %v400, 20
        %v705 = vpop.permute.xlu0 %704
        %706 = vrot.lane.b32.xlu0 %v404, 20
        %v707 = vpop.permute.xlu0 %706
        %708 = vrot.lane.b32.xlu0 %v403, 20
        %v709 = vpop.permute.xlu0 %708
        %710 = vrot.lane.b32.xlu0 %v407, 20
        %v711 = vpop.permute.xlu0 %710
        %712 = vrot.lane.b32.xlu0 %v406, 20
        %v713 = vpop.permute.xlu0 %712
        %714 = vrot.lane.b32.xlu0 %v410, 20
        %v715 = vpop.permute.xlu0 %714
        %716 = vrot.lane.b32.xlu0 %v409, 20
        %v717 = vpop.permute.xlu0 %716
        %718 = vrot.lane.b32.xlu0 %v413, 20
        %v719 = vpop.permute.xlu0 %718
        %720 = vrot.lane.b32.xlu0 %v412, 20
        %v721 = vpop.permute.xlu0 %720
        %722 = vrot.lane.b32.xlu0 %v416, 20
        %v723 = vpop.permute.xlu0 %722
        %724 = vrot.lane.b32.xlu0 %v415, 20
        %v725 = vpop.permute.xlu0 %724
        %726 = vrot.lane.b32.xlu0 %v419, 20
        %v727 = vpop.permute.xlu0 %726
        %728 = vrot.lane.b32.xlu0 %v418, 20
        %v729 = vpop.permute.xlu0 %728
        %730 = vrot.lane.b32.xlu0 %v422, 20
        %v731 = vpop.permute.xlu0 %730
        %732 = vrot.lane.b32.xlu0 %v421, 20
        %v733 = vpop.permute.xlu0 %732
        %734 = vrot.lane.b32.xlu0 %v425, 20
        %v735 = vpop.permute.xlu0 %734
        %736 = vrot.lane.b32.xlu0 %v424, 20
        %v737 = vpop.permute.xlu0 %736
        %738 = vrot.lane.b32.xlu0 %v685, 20
        %v739 = vpop.permute.xlu0 %738
        %740 = vrot.lane.b32.xlu0 %v684, 20
        %v741 = vpop.permute.xlu0 %740
        %772 = vrot.lane.b32.xlu0 %v200, 24
        %v773 = vpop.permute.xlu0 %772
        %774 = vrot.lane.b32.xlu0 %v201, 24
        %v775 = vpop.permute.xlu0 %774
        %776 = vrot.lane.b32.xlu0 %v202, 24
        %v777 = vpop.permute.xlu0 %776
        %778 = vrot.lane.b32.xlu0 %v203, 24
        %v779 = vpop.permute.xlu0 %778
        %780 = vrot.lane.b32.xlu0 %v204, 24
        %v781 = vpop.permute.xlu0 %780
        %782 = vrot.lane.b32.xlu0 %v205, 24
        %v783 = vpop.permute.xlu0 %782
        %784 = vrot.lane.b32.xlu0 %v206, 24
        %v785 = vpop.permute.xlu0 %784
        %786 = vrot.lane.b32.xlu0 %v207, 24
        %v787 = vpop.permute.xlu0 %786
        %788 = vrot.lane.b32.xlu0 %v208, 24
        %v789 = vpop.permute.xlu0 %788
        %790 = vrot.lane.b32.xlu0 %v209, 24
        %v791 = vpop.permute.xlu0 %790
        %792 = vrot.lane.b32.xlu0 %v210, 24
        %v793 = vpop.permute.xlu0 %792
        %794 = vrot.lane.b32.xlu0 %v211, 24
        %v795 = vpop.permute.xlu0 %794
        %796 = vrot.lane.b32.xlu0 %v212, 24
        %v797 = vpop.permute.xlu0 %796
        %798 = vrot.lane.b32.xlu0 %v213, 24
        %v799 = vpop.permute.xlu0 %798
        %800 = vrot.lane.b32.xlu0 %v214, 24
        %v801 = vpop.permute.xlu0 %800
        %802 = vrot.lane.b32.xlu0 %v215, 24
        %v803 = vpop.permute.xlu0 %802
        %804 = vrot.lane.b32.xlu0 %v216, 24
        %v805 = vpop.permute.xlu0 %804
        %806 = vrot.lane.b32.xlu0 %v217, 24
        %v807 = vpop.permute.xlu0 %806
        %808 = vrot.lane.b32.xlu0 %v218, 24
        %v809 = vpop.permute.xlu0 %808
        %810 = vrot.lane.b32.xlu0 %v219, 24
        %v811 = vpop.permute.xlu0 %810
        %812 = vrot.lane.b32.xlu0 %v220, 24
        %v813 = vpop.permute.xlu0 %812
        %814 = vrot.lane.b32.xlu0 %v221, 24
        %v815 = vpop.permute.xlu0 %814
        %816 = vrot.lane.b32.xlu0 %v222, 24
        %v817 = vpop.permute.xlu0 %816
        %818 = vrot.lane.b32.xlu0 %v223, 24
        %v819 = vpop.permute.xlu0 %818
        %820 = vrot.lane.b32.xlu0 %v224, 24
        %v821 = vpop.permute.xlu0 %820
        %822 = vrot.lane.b32.xlu0 %v225, 24
        %v823 = vpop.permute.xlu0 %822
        %824 = vrot.lane.b32.xlu0 %v226, 24
        %v825 = vpop.permute.xlu0 %824
        %826 = vrot.lane.b32.xlu0 %v227, 24
        %v827 = vpop.permute.xlu0 %826
        %v856 = vrot.slane %v226, 1
        %v857 = vrot.slane %v227, 1
        %v858 = vsel %vm256, %v856, %v857
        %859 = vrot.lane.b32.xlu0 %v265, 28
        %v860 = vpop.permute.xlu0 %859
        %861 = vrot.lane.b32.xlu0 %v264, 28
        %v862 = vpop.permute.xlu0 %861
        %863 = vrot.lane.b32.xlu0 %v268, 28
        %v864 = vpop.permute.xlu0 %863
        %865 = vrot.lane.b32.xlu0 %v267, 28
        %v866 = vpop.permute.xlu0 %865
        %867 = vrot.lane.b32.xlu0 %v271, 28
        %v868 = vpop.permute.xlu0 %867
        %869 = vrot.lane.b32.xlu0 %v270, 28
        %v870 = vpop.permute.xlu0 %869
        %871 = vrot.lane.b32.xlu0 %v274, 28
        %v872 = vpop.permute.xlu0 %871
        %873 = vrot.lane.b32.xlu0 %v273, 28
        %v874 = vpop.permute.xlu0 %873
        %875 = vrot.lane.b32.xlu0 %v277, 28
        %v876 = vpop.permute.xlu0 %875
        %877 = vrot.lane.b32.xlu0 %v276, 28
        %v878 = vpop.permute.xlu0 %877
        %879 = vrot.lane.b32.xlu0 %v280, 28
        %v880 = vpop.permute.xlu0 %879
        %881 = vrot.lane.b32.xlu0 %v279, 28
        %v882 = vpop.permute.xlu0 %881
        %883 = vrot.lane.b32.xlu0 %v283, 28
        %v884 = vpop.permute.xlu0 %883
        %885 = vrot.lane.b32.xlu0 %v282, 28
        %v886 = vpop.permute.xlu0 %885
        %887 = vrot.lane.b32.xlu0 %v286, 28
        %v888 = vpop.permute.xlu0 %887
        %889 = vrot.lane.b32.xlu0 %v285, 28
        %v890 = vpop.permute.xlu0 %889
        %891 = vrot.lane.b32.xlu0 %v289, 28
        %v892 = vpop.permute.xlu0 %891
        %893 = vrot.lane.b32.xlu0 %v288, 28
        %v894 = vpop.permute.xlu0 %893
        %895 = vrot.lane.b32.xlu0 %v292, 28
        %v896 = vpop.permute.xlu0 %895
        %897 = vrot.lane.b32.xlu0 %v291, 28
        %v898 = vpop.permute.xlu0 %897
        %899 = vrot.lane.b32.xlu0 %v295, 28
        %v900 = vpop.permute.xlu0 %899
        %901 = vrot.lane.b32.xlu0 %v294, 28
        %v902 = vpop.permute.xlu0 %901
        %903 = vrot.lane.b32.xlu0 %v298, 28
        %v904 = vpop.permute.xlu0 %903
        %905 = vrot.lane.b32.xlu0 %v297, 28
        %v906 = vpop.permute.xlu0 %905
        %907 = vrot.lane.b32.xlu0 %v598, 28
        %v908 = vpop.permute.xlu0 %907
        %909 = vrot.lane.b32.xlu0 %v597, 28
        %v910 = vpop.permute.xlu0 %909
        %911 = vrot.lane.b32.xlu0 %v858, 28
        %v912 = vpop.permute.xlu0 %911
        %913 = vrot.lane.b32.xlu0 %v857, 28
        %v914 = vpop.permute.xlu0 %913
        %v943 = vrot.slane %v226, 2
        %v944 = vrot.slane %v227, 2
        %v945 = vsel %vm383, %v943, %v944
        %946 = vrot.lane.b32.xlu0 %v392, 32
        %v947 = vpop.permute.xlu0 %946
        %948 = vrot.lane.b32.xlu0 %v391, 32
        %v949 = vpop.permute.xlu0 %948
        %950 = vrot.lane.b32.xlu0 %v395, 32
        %v951 = vpop.permute.xlu0 %950
        %952 = vrot.lane.b32.xlu0 %v394, 32
        %v953 = vpop.permute.xlu0 %952
        %954 = vrot.lane.b32.xlu0 %v398, 32
        %v955 = vpop.permute.xlu0 %954
        %956 = vrot.lane.b32.xlu0 %v397, 32
        %v957 = vpop.permute.xlu0 %956
        %958 = vrot.lane.b32.xlu0 %v401, 32
        %v959 = vpop.permute.xlu0 %958
        %960 = vrot.lane.b32.xlu0 %v400, 32
        %v961 = vpop.permute.xlu0 %960
        %962 = vrot.lane.b32.xlu0 %v404, 32
        %v963 = vpop.permute.xlu0 %962
        %964 = vrot.lane.b32.xlu0 %v403, 32
        %v965 = vpop.permute.xlu0 %964
        %966 = vrot.lane.b32.xlu0 %v407, 32
        %v967 = vpop.permute.xlu0 %966
        %968 = vrot.lane.b32.xlu0 %v406, 32
        %v969 = vpop.permute.xlu0 %968
        %970 = vrot.lane.b32.xlu0 %v410, 32
        %v971 = vpop.permute.xlu0 %970
        %972 = vrot.lane.b32.xlu0 %v409, 32
        %v973 = vpop.permute.xlu0 %972
        %974 = vrot.lane.b32.xlu0 %v413, 32
        %v975 = vpop.permute.xlu0 %974
        %976 = vrot.lane.b32.xlu0 %v412, 32
        %v977 = vpop.permute.xlu0 %976
        %978 = vrot.lane.b32.xlu0 %v416, 32
        %v979 = vpop.permute.xlu0 %978
        %980 = vrot.lane.b32.xlu0 %v415, 32
        %v981 = vpop.permute.xlu0 %980
        %982 = vrot.lane.b32.xlu0 %v419, 32
        %v983 = vpop.permute.xlu0 %982
        %984 = vrot.lane.b32.xlu0 %v418, 32
        %v985 = vpop.permute.xlu0 %984
        %986 = vrot.lane.b32.xlu0 %v422, 32
        %v987 = vpop.permute.xlu0 %986
        %988 = vrot.lane.b32.xlu0 %v421, 32
        %v989 = vpop.permute.xlu0 %988
        %990 = vrot.lane.b32.xlu0 %v425, 32
        %v991 = vpop.permute.xlu0 %990
        %992 = vrot.lane.b32.xlu0 %v424, 32
        %v993 = vpop.permute.xlu0 %992
        %994 = vrot.lane.b32.xlu0 %v685, 32
        %v995 = vpop.permute.xlu0 %994
        %996 = vrot.lane.b32.xlu0 %v684, 32
        %v997 = vpop.permute.xlu0 %996
        %998 = vrot.lane.b32.xlu0 %v945, 32
        %v999 = vpop.permute.xlu0 %998
        %1000 = vrot.lane.b32.xlu0 %v944, 32
        %v1001 = vpop.permute.xlu0 %1000
        %vm1030 = vcmask 31744
        %v1031 = vsel %vm1030, %v196, %v300
        %v1032 = vsel %vm1030, %v197, %v302
        %v1033 = vsel %vm1030, %v198, %v304
        %v1034 = vsel %vm1030, %v199, %v306
        %v1035 = vsel %vm1030, %v200, %v308
        %v1036 = vsel %vm1030, %v201, %v310
        %v1037 = vsel %vm1030, %v202, %v312
        %v1038 = vsel %vm1030, %v203, %v314
        %v1039 = vsel %vm1030, %v204, %v316
        %v1040 = vsel %vm1030, %v205, %v318
        %v1041 = vsel %vm1030, %v206, %v320
        %v1042 = vsel %vm1030, %v207, %v322
        %v1043 = vsel %vm1030, %v208, %v324
        %v1044 = vsel %vm1030, %v209, %v326
        %v1045 = vsel %vm1030, %v210, %v328
        %v1046 = vsel %vm1030, %v211, %v330
        %v1047 = vsel %vm1030, %v212, %v332
        %v1048 = vsel %vm1030, %v213, %v334
        %v1049 = vsel %vm1030, %v214, %v336
        %v1050 = vsel %vm1030, %v215, %v338
        %v1051 = vsel %vm1030, %v216, %v340
        %v1052 = vsel %vm1030, %v217, %v342
        %v1053 = vsel %vm1030, %v218, %v344
        %v1054 = vsel %vm1030, %v219, %v346
        %v1055 = vsel %vm1030, %v220, %v348
        %v1056 = vsel %vm1030, %v221, %v350
        %v1057 = vsel %vm1030, %v222, %v352
        %v1058 = vsel %vm1030, %v223, %v354
        %vm1059 = vcmask 64512
        %v1060 = vsel %vm1059, %v1031, %v427
        %v1061 = vsel %vm1059, %v1032, %v429
        %v1062 = vsel %vm1059, %v1033, %v431
        %v1063 = vsel %vm1059, %v1034, %v433
        %v1064 = vsel %vm1059, %v1035, %v435
        %v1065 = vsel %vm1059, %v1036, %v437
        %v1066 = vsel %vm1059, %v1037, %v439
        %v1067 = vsel %vm1059, %v1038, %v441
        %v1068 = vsel %vm1059, %v1039, %v443
        %v1069 = vsel %vm1059, %v1040, %v445
        %v1070 = vsel %vm1059, %v1041, %v447
        %v1071 = vsel %vm1059, %v1042, %v449
        %v1072 = vsel %vm1059, %v1043, %v451
        %v1073 = vsel %vm1059, %v1044, %v453
        %v1074 = vsel %vm1059, %v1045, %v455
        %v1075 = vsel %vm1059, %v1046, %v457
        %v1076 = vsel %vm1059, %v1047, %v459
        %v1077 = vsel %vm1059, %v1048, %v461
        %v1078 = vsel %vm1059, %v1049, %v463
        %v1079 = vsel %vm1059, %v1050, %v465
        %v1080 = vsel %vm1059, %v1051, %v467
        %v1081 = vsel %vm1059, %v1052, %v469
        %v1082 = vsel %vm1059, %v1053, %v471
        %v1083 = vsel %vm1059, %v1054, %v473
        %v1084 = vsel %vm1059, %v1055, %v475
        %v1085 = vsel %vm1059, %v1056, %v477
        %v1086 = vsel %vm1059, %v1057, %v479
        %v1087 = vsel %vm1059, %v1058, %v481
        %vm1088 = vcmask 97280
        %v1089 = vsel %vm1088, %v1060, %v513
        %v1090 = vsel %vm1088, %v1061, %v515
        %v1091 = vsel %vm1088, %v1062, %v517
        %v1092 = vsel %vm1088, %v1063, %v519
        %v1093 = vsel %vm1088, %v1064, %v521
        %v1094 = vsel %vm1088, %v1065, %v523
        %v1095 = vsel %vm1088, %v1066, %v525
        %v1096 = vsel %vm1088, %v1067, %v527
        %v1097 = vsel %vm1088, %v1068, %v529
        %v1098 = vsel %vm1088, %v1069, %v531
        %v1099 = vsel %vm1088, %v1070, %v533
        %v1100 = vsel %vm1088, %v1071, %v535
        %v1101 = vsel %vm1088, %v1072, %v537
        %v1102 = vsel %vm1088, %v1073, %v539
        %v1103 = vsel %vm1088, %v1074, %v541
        %v1104 = vsel %vm1088, %v1075, %v543
        %v1105 = vsel %vm1088, %v1076, %v545
        %v1106 = vsel %vm1088, %v1077, %v547
        %v1107 = vsel %vm1088, %v1078, %v549
        %v1108 = vsel %vm1088, %v1079, %v551
        %v1109 = vsel %vm1088, %v1080, %v553
        %v1110 = vsel %vm1088, %v1081, %v555
        %v1111 = vsel %vm1088, %v1082, %v557
        %v1112 = vsel %vm1088, %v1083, %v559
        %v1113 = vsel %vm1088, %v1084, %v561
        %v1114 = vsel %vm1088, %v1085, %v563
        %v1115 = vsel %vm1088, %v1086, %v565
        %v1116 = vsel %vm1088, %v1087, %v567
        %vm1117 = vcmask 130048
        %v1118 = vsel %vm1117, %v1089, %v600
        %v1119 = vsel %vm1117, %v1090, %v602
        %v1120 = vsel %vm1117, %v1091, %v604
        %v1121 = vsel %vm1117, %v1092, %v606
        %v1122 = vsel %vm1117, %v1093, %v608
        %v1123 = vsel %vm1117, %v1094, %v610
        %v1124 = vsel %vm1117, %v1095, %v612
        %v1125 = vsel %vm1117, %v1096, %v614
        %v1126 = vsel %vm1117, %v1097, %v616
        %v1127 = vsel %vm1117, %v1098, %v618
        %v1128 = vsel %vm1117, %v1099, %v620
        %v1129 = vsel %vm1117, %v1100, %v622
        %v1130 = vsel %vm1117, %v1101, %v624
        %v1131 = vsel %vm1117, %v1102, %v626
        %v1132 = vsel %vm1117, %v1103, %v628
        %v1133 = vsel %vm1117, %v1104, %v630
        %v1134 = vsel %vm1117, %v1105, %v632
        %v1135 = vsel %vm1117, %v1106, %v634
        %v1136 = vsel %vm1117, %v1107, %v636
        %v1137 = vsel %vm1117, %v1108, %v638
        %v1138 = vsel %vm1117, %v1109, %v640
        %v1139 = vsel %vm1117, %v1110, %v642
        %v1140 = vsel %vm1117, %v1111, %v644
        %v1141 = vsel %vm1117, %v1112, %v646
        %v1142 = vsel %vm1117, %v1113, %v648
        %v1143 = vsel %vm1117, %v1114, %v650
        %v1144 = vsel %vm1117, %v1115, %v652
        %v1145 = vsel %vm1117, %v1116, %v654
        %vm1146 = vcmask 162816
        %v1147 = vsel %vm1146, %v1118, %v687
        %v1148 = vsel %vm1146, %v1119, %v689
        %v1149 = vsel %vm1146, %v1120, %v691
        %v1150 = vsel %vm1146, %v1121, %v693
        %v1151 = vsel %vm1146, %v1122, %v695
        %v1152 = vsel %vm1146, %v1123, %v697
        %v1153 = vsel %vm1146, %v1124, %v699
        %v1154 = vsel %vm1146, %v1125, %v701
        %v1155 = vsel %vm1146, %v1126, %v703
        %v1156 = vsel %vm1146, %v1127, %v705
        %v1157 = vsel %vm1146, %v1128, %v707
        %v1158 = vsel %vm1146, %v1129, %v709
        %v1159 = vsel %vm1146, %v1130, %v711
        %v1160 = vsel %vm1146, %v1131, %v713
        %v1161 = vsel %vm1146, %v1132, %v715
        %v1162 = vsel %vm1146, %v1133, %v717
        %v1163 = vsel %vm1146, %v1134, %v719
        %v1164 = vsel %vm1146, %v1135, %v721
        %v1165 = vsel %vm1146, %v1136, %v723
        %v1166 = vsel %vm1146, %v1137, %v725
        %v1167 = vsel %vm1146, %v1138, %v727
        %v1168 = vsel %vm1146, %v1139, %v729
        %v1169 = vsel %vm1146, %v1140, %v731
        %v1170 = vsel %vm1146, %v1141, %v733
        %v1171 = vsel %vm1146, %v1142, %v735
        %v1172 = vsel %vm1146, %v1143, %v737
        %v1173 = vsel %vm1146, %v1144, %v739
        %v1174 = vsel %vm1146, %v1145, %v741
        %vm1175 = vcmask 195584
        %v1176 = vsel %vm1175, %v1147, %v773
        %v1177 = vsel %vm1175, %v1148, %v775
        %v1178 = vsel %vm1175, %v1149, %v777
        %v1179 = vsel %vm1175, %v1150, %v779
        %v1180 = vsel %vm1175, %v1151, %v781
        %v1181 = vsel %vm1175, %v1152, %v783
        %v1182 = vsel %vm1175, %v1153, %v785
        %v1183 = vsel %vm1175, %v1154, %v787
        %v1184 = vsel %vm1175, %v1155, %v789
        %v1185 = vsel %vm1175, %v1156, %v791
        %v1186 = vsel %vm1175, %v1157, %v793
        %v1187 = vsel %vm1175, %v1158, %v795
        %v1188 = vsel %vm1175, %v1159, %v797
        %v1189 = vsel %vm1175, %v1160, %v799
        %v1190 = vsel %vm1175, %v1161, %v801
        %v1191 = vsel %vm1175, %v1162, %v803
        %v1192 = vsel %vm1175, %v1163, %v805
        %v1193 = vsel %vm1175, %v1164, %v807
        %v1194 = vsel %vm1175, %v1165, %v809
        %v1195 = vsel %vm1175, %v1166, %v811
        %v1196 = vsel %vm1175, %v1167, %v813
        %v1197 = vsel %vm1175, %v1168, %v815
        %v1198 = vsel %vm1175, %v1169, %v817
        %v1199 = vsel %vm1175, %v1170, %v819
        %v1200 = vsel %vm1175, %v1171, %v821
        %v1201 = vsel %vm1175, %v1172, %v823
        %v1202 = vsel %vm1175, %v1173, %v825
        %v1203 = vsel %vm1175, %v1174, %v827
        %vm1204 = vcmask 228352
        %v1205 = vsel %vm1204, %v1176, %v860
        %v1206 = vsel %vm1204, %v1177, %v862
        %v1207 = vsel %vm1204, %v1178, %v864
        %v1208 = vsel %vm1204, %v1179, %v866
        %v1209 = vsel %vm1204, %v1180, %v868
        %v1210 = vsel %vm1204, %v1181, %v870
        %v1211 = vsel %vm1204, %v1182, %v872
        %v1212 = vsel %vm1204, %v1183, %v874
        %v1213 = vsel %vm1204, %v1184, %v876
        %v1214 = vsel %vm1204, %v1185, %v878
        %v1215 = vsel %vm1204, %v1186, %v880
        %v1216 = vsel %vm1204, %v1187, %v882
        %v1217 = vsel %vm1204, %v1188, %v884
        %v1218 = vsel %vm1204, %v1189, %v886
        %v1219 = vsel %vm1204, %v1190, %v888
        %v1220 = vsel %vm1204, %v1191, %v890
        %v1221 = vsel %vm1204, %v1192, %v892
        %v1222 = vsel %vm1204, %v1193, %v894
        %v1223 = vsel %vm1204, %v1194, %v896
        %v1224 = vsel %vm1204, %v1195, %v898
        %v1225 = vsel %vm1204, %v1196, %v900
        %v1226 = vsel %vm1204, %v1197, %v902
        %v1227 = vsel %vm1204, %v1198, %v904
        %v1228 = vsel %vm1204, %v1199, %v906
        %v1229 = vsel %vm1204, %v1200, %v908
        %v1230 = vsel %vm1204, %v1201, %v910
        %v1231 = vsel %vm1204, %v1202, %v912
        %v1232 = vsel %vm1204, %v1203, %v914
        %vm1233 = vcmask 261120
        %v1234 = vsel %vm1233, %v1205, %v947
        %v1235 = vsel %vm1233, %v1206, %v949
        %v1236 = vsel %vm1233, %v1207, %v951
        %v1237 = vsel %vm1233, %v1208, %v953
        %v1238 = vsel %vm1233, %v1209, %v955
        %v1239 = vsel %vm1233, %v1210, %v957
        %v1240 = vsel %vm1233, %v1211, %v959
        %v1241 = vsel %vm1233, %v1212, %v961
        %v1242 = vsel %vm1233, %v1213, %v963
        %v1243 = vsel %vm1233, %v1214, %v965
        %v1244 = vsel %vm1233, %v1215, %v967
        %v1245 = vsel %vm1233, %v1216, %v969
        %v1246 = vsel %vm1233, %v1217, %v971
        %v1247 = vsel %vm1233, %v1218, %v973
        %v1248 = vsel %vm1233, %v1219, %v975
        %v1249 = vsel %vm1233, %v1220, %v977
        %v1250 = vsel %vm1233, %v1221, %v979
        %v1251 = vsel %vm1233, %v1222, %v981
        %v1252 = vsel %vm1233, %v1223, %v983
        %v1253 = vsel %vm1233, %v1224, %v985
        %v1254 = vsel %vm1233, %v1225, %v987
        %v1255 = vsel %vm1233, %v1226, %v989
        %v1256 = vsel %vm1233, %v1227, %v991
        %v1257 = vsel %vm1233, %v1228, %v993
        %v1258 = vsel %vm1233, %v1229, %v995
        %v1259 = vsel %vm1233, %v1230, %v997
        %v1260 = vsel %vm1233, %v1231, %v999
        %v1261 = vsel %vm1233, %v1232, %v1001
        %v1290 = vcombine.high %v1234, %v1234
        %v1292 = vunpack.c.l.s4 1983009808
        %v1293 = vunpack.c.0.s8 %v1292
        %v1294 = vlaneseq
        %v1295 = vshrl.u32 %v1294, 7
        %v1296 = vsub.s32 %v1293, %v1295
        %v1297 = vrot.slane %v1234, %v1296
        %v1299 = vunpack.c.l.s4 1983009808
        %v1300 = vunpack.c.0.s8 %v1299
        %v1301 = vlaneseq
        %v1302 = vshrl.u32 %v1301, 7
        %v1303 = vsub.s32 %v1300, %v1302
        %v1304 = vrot.slane %v1290, %v1303
        %v1305 = vcombine.high %v1297, %v1297
        %v1306 = vcombine.high %v1304, %v1304
        %v1307 = vcombine.high %v1235, %v1235
        %v1309 = vunpack.c.l.s4 1983009808
        %v1310 = vunpack.c.0.s8 %v1309
        %v1311 = vlaneseq
        %v1312 = vshrl.u32 %v1311, 7
        %v1313 = vsub.s32 %v1310, %v1312
        %v1314 = vrot.slane %v1235, %v1313
        %v1316 = vunpack.c.l.s4 1983009808
        %v1317 = vunpack.c.0.s8 %v1316
        %v1318 = vlaneseq
        %v1319 = vshrl.u32 %v1318, 7
        %v1320 = vsub.s32 %v1317, %v1319
        %v1321 = vrot.slane %v1307, %v1320
        %v1322 = vcombine.high %v1314, %v1314
        %v1323 = vcombine.high %v1236, %v1236
        %v1325 = vunpack.c.l.s4 1983009808
        %v1326 = vunpack.c.0.s8 %v1325
        %v1327 = vlaneseq
        %v1328 = vshrl.u32 %v1327, 7
        %v1329 = vsub.s32 %v1326, %v1328
        %v1330 = vrot.slane %v1236, %v1329
        %v1332 = vunpack.c.l.s4 1983009808
        %v1333 = vunpack.c.0.s8 %v1332
        %v1334 = vlaneseq
        %v1335 = vshrl.u32 %v1334, 7
        %v1336 = vsub.s32 %v1333, %v1335
        %v1337 = vrot.slane %v1323, %v1336
        %v1338 = vcombine.high %v1330, %v1330
        %v1339 = vcombine.high %v1337, %v1337
        %v1340 = vcombine.high %v1237, %v1237
        %v1342 = vunpack.c.l.s4 1983009808
        %v1343 = vunpack.c.0.s8 %v1342
        %v1344 = vlaneseq
        %v1345 = vshrl.u32 %v1344, 7
        %v1346 = vsub.s32 %v1343, %v1345
        %v1347 = vrot.slane %v1237, %v1346
        %v1349 = vunpack.c.l.s4 1983009808
        %v1350 = vunpack.c.0.s8 %v1349
        %v1351 = vlaneseq
        %v1352 = vshrl.u32 %v1351, 7
        %v1353 = vsub.s32 %v1350, %v1352
        %v1354 = vrot.slane %v1340, %v1353
        %v1355 = vcombine.high %v1347, %v1347
        %v1356 = vcombine.high %v1238, %v1238
        %v1358 = vunpack.c.l.s4 1983009808
        %v1359 = vunpack.c.0.s8 %v1358
        %v1360 = vlaneseq
        %v1361 = vshrl.u32 %v1360, 7
        %v1362 = vsub.s32 %v1359, %v1361
        %v1363 = vrot.slane %v1238, %v1362
        %v1365 = vunpack.c.l.s4 1983009808
        %v1366 = vunpack.c.0.s8 %v1365
        %v1367 = vlaneseq
        %v1368 = vshrl.u32 %v1367, 7
        %v1369 = vsub.s32 %v1366, %v1368
        %v1370 = vrot.slane %v1356, %v1369
        %v1371 = vcombine.high %v1363, %v1363
        %v1372 = vcombine.high %v1370, %v1370
        %v1373 = vcombine.high %v1239, %v1239
        %v1375 = vunpack.c.l.s4 1983009808
        %v1376 = vunpack.c.0.s8 %v1375
        %v1377 = vlaneseq
        %v1378 = vshrl.u32 %v1377, 7
        %v1379 = vsub.s32 %v1376, %v1378
        %v1380 = vrot.slane %v1239, %v1379
        %v1382 = vunpack.c.l.s4 1983009808
        %v1383 = vunpack.c.0.s8 %v1382
        %v1384 = vlaneseq
        %v1385 = vshrl.u32 %v1384, 7
        %v1386 = vsub.s32 %v1383, %v1385
        %v1387 = vrot.slane %v1373, %v1386
        %v1388 = vcombine.high %v1380, %v1380
        %v1389 = vcombine.high %v1240, %v1240
        %v1391 = vunpack.c.l.s4 1983009808
        %v1392 = vunpack.c.0.s8 %v1391
        %v1393 = vlaneseq
        %v1394 = vshrl.u32 %v1393, 7
        %v1395 = vsub.s32 %v1392, %v1394
        %v1396 = vrot.slane %v1240, %v1395
        %v1398 = vunpack.c.l.s4 1983009808
        %v1399 = vunpack.c.0.s8 %v1398
        %v1400 = vlaneseq
        %v1401 = vshrl.u32 %v1400, 7
        %v1402 = vsub.s32 %v1399, %v1401
        %v1403 = vrot.slane %v1389, %v1402
        %v1404 = vcombine.high %v1396, %v1396
        %v1405 = vcombine.high %v1403, %v1403
        %v1406 = vcombine.high %v1241, %v1241
        %v1408 = vunpack.c.l.s4 1983009808
        %v1409 = vunpack.c.0.s8 %v1408
        %v1410 = vlaneseq
        %v1411 = vshrl.u32 %v1410, 7
        %v1412 = vsub.s32 %v1409, %v1411
        %v1413 = vrot.slane %v1241, %v1412
        %v1415 = vunpack.c.l.s4 1983009808
        %v1416 = vunpack.c.0.s8 %v1415
        %v1417 = vlaneseq
        %v1418 = vshrl.u32 %v1417, 7
        %v1419 = vsub.s32 %v1416, %v1418
        %v1420 = vrot.slane %v1406, %v1419
        %v1421 = vcombine.high %v1413, %v1413
        %v1422 = vcombine.high %v1242, %v1242
        %v1424 = vunpack.c.l.s4 1983009808
        %v1425 = vunpack.c.0.s8 %v1424
        %v1426 = vlaneseq
        %v1427 = vshrl.u32 %v1426, 7
        %v1428 = vsub.s32 %v1425, %v1427
        %v1429 = vrot.slane %v1242, %v1428
        %v1431 = vunpack.c.l.s4 1983009808
        %v1432 = vunpack.c.0.s8 %v1431
        %v1433 = vlaneseq
        %v1434 = vshrl.u32 %v1433, 7
        %v1435 = vsub.s32 %v1432, %v1434
        %v1436 = vrot.slane %v1422, %v1435
        %v1437 = vcombine.high %v1429, %v1429
        %v1438 = vcombine.high %v1436, %v1436
        %v1439 = vcombine.high %v1243, %v1243
        %v1441 = vunpack.c.l.s4 1983009808
        %v1442 = vunpack.c.0.s8 %v1441
        %v1443 = vlaneseq
        %v1444 = vshrl.u32 %v1443, 7
        %v1445 = vsub.s32 %v1442, %v1444
        %v1446 = vrot.slane %v1243, %v1445
        %v1448 = vunpack.c.l.s4 1983009808
        %v1449 = vunpack.c.0.s8 %v1448
        %v1450 = vlaneseq
        %v1451 = vshrl.u32 %v1450, 7
        %v1452 = vsub.s32 %v1449, %v1451
        %v1453 = vrot.slane %v1439, %v1452
        %v1454 = vcombine.high %v1446, %v1446
        %v1455 = vcombine.high %v1244, %v1244
        %v1457 = vunpack.c.l.s4 1983009808
        %v1458 = vunpack.c.0.s8 %v1457
        %v1459 = vlaneseq
        %v1460 = vshrl.u32 %v1459, 7
        %v1461 = vsub.s32 %v1458, %v1460
        %v1462 = vrot.slane %v1244, %v1461
        %v1464 = vunpack.c.l.s4 1983009808
        %v1465 = vunpack.c.0.s8 %v1464
        %v1466 = vlaneseq
        %v1467 = vshrl.u32 %v1466, 7
        %v1468 = vsub.s32 %v1465, %v1467
        %v1469 = vrot.slane %v1455, %v1468
        %v1470 = vcombine.high %v1462, %v1462
        %v1471 = vcombine.high %v1469, %v1469
        %v1472 = vcombine.high %v1245, %v1245
        %v1474 = vunpack.c.l.s4 1983009808
        %v1475 = vunpack.c.0.s8 %v1474
        %v1476 = vlaneseq
        %v1477 = vshrl.u32 %v1476, 7
        %v1478 = vsub.s32 %v1475, %v1477
        %v1479 = vrot.slane %v1245, %v1478
        %v1481 = vunpack.c.l.s4 1983009808
        %v1482 = vunpack.c.0.s8 %v1481
        %v1483 = vlaneseq
        %v1484 = vshrl.u32 %v1483, 7
        %v1485 = vsub.s32 %v1482, %v1484
        %v1486 = vrot.slane %v1472, %v1485
        %v1487 = vcombine.high %v1479, %v1479
        %v1488 = vcombine.high %v1246, %v1246
        %v1490 = vunpack.c.l.s4 1983009808
        %v1491 = vunpack.c.0.s8 %v1490
        %v1492 = vlaneseq
        %v1493 = vshrl.u32 %v1492, 7
        %v1494 = vsub.s32 %v1491, %v1493
        %v1495 = vrot.slane %v1246, %v1494
        %v1497 = vunpack.c.l.s4 1983009808
        %v1498 = vunpack.c.0.s8 %v1497
        %v1499 = vlaneseq
        %v1500 = vshrl.u32 %v1499, 7
        %v1501 = vsub.s32 %v1498, %v1500
        %v1502 = vrot.slane %v1488, %v1501
        %v1503 = vcombine.high %v1495, %v1495
        %v1504 = vcombine.high %v1502, %v1502
        %v1505 = vcombine.high %v1247, %v1247
        %v1507 = vunpack.c.l.s4 1983009808
        %v1508 = vunpack.c.0.s8 %v1507
        %v1509 = vlaneseq
        %v1510 = vshrl.u32 %v1509, 7
        %v1511 = vsub.s32 %v1508, %v1510
        %v1512 = vrot.slane %v1247, %v1511
        %v1514 = vunpack.c.l.s4 1983009808
        %v1515 = vunpack.c.0.s8 %v1514
        %v1516 = vlaneseq
        %v1517 = vshrl.u32 %v1516, 7
        %v1518 = vsub.s32 %v1515, %v1517
        %v1519 = vrot.slane %v1505, %v1518
        %v1520 = vcombine.high %v1512, %v1512
        %v1521 = vcombine.high %v1248, %v1248
        %v1523 = vunpack.c.l.s4 1983009808
        %v1524 = vunpack.c.0.s8 %v1523
        %v1525 = vlaneseq
        %v1526 = vshrl.u32 %v1525, 7
        %v1527 = vsub.s32 %v1524, %v1526
        %v1528 = vrot.slane %v1248, %v1527
        %v1530 = vunpack.c.l.s4 1983009808
        %v1531 = vunpack.c.0.s8 %v1530
        %v1532 = vlaneseq
        %v1533 = vshrl.u32 %v1532, 7
        %v1534 = vsub.s32 %v1531, %v1533
        %v1535 = vrot.slane %v1521, %v1534
        %v1536 = vcombine.high %v1528, %v1528
        %v1537 = vcombine.high %v1535, %v1535
        %v1538 = vcombine.high %v1249, %v1249
        %v1540 = vunpack.c.l.s4 1983009808
        %v1541 = vunpack.c.0.s8 %v1540
        %v1542 = vlaneseq
        %v1543 = vshrl.u32 %v1542, 7
        %v1544 = vsub.s32 %v1541, %v1543
        %v1545 = vrot.slane %v1249, %v1544
        %v1547 = vunpack.c.l.s4 1983009808
        %v1548 = vunpack.c.0.s8 %v1547
        %v1549 = vlaneseq
        %v1550 = vshrl.u32 %v1549, 7
        %v1551 = vsub.s32 %v1548, %v1550
        %v1552 = vrot.slane %v1538, %v1551
        %v1553 = vcombine.high %v1545, %v1545
        %v1554 = vcombine.high %v1250, %v1250
        %v1556 = vunpack.c.l.s4 1983009808
        %v1557 = vunpack.c.0.s8 %v1556
        %v1558 = vlaneseq
        %v1559 = vshrl.u32 %v1558, 7
        %v1560 = vsub.s32 %v1557, %v1559
        %v1561 = vrot.slane %v1250, %v1560
        %v1563 = vunpack.c.l.s4 1983009808
        %v1564 = vunpack.c.0.s8 %v1563
        %v1565 = vlaneseq
        %v1566 = vshrl.u32 %v1565, 7
        %v1567 = vsub.s32 %v1564, %v1566
        %v1568 = vrot.slane %v1554, %v1567
        %v1569 = vcombine.high %v1561, %v1561
        %v1570 = vcombine.high %v1568, %v1568
        %v1571 = vcombine.high %v1251, %v1251
        %v1573 = vunpack.c.l.s4 1983009808
        %v1574 = vunpack.c.0.s8 %v1573
        %v1575 = vlaneseq
        %v1576 = vshrl.u32 %v1575, 7
        %v1577 = vsub.s32 %v1574, %v1576
        %v1578 = vrot.slane %v1251, %v1577
        %v1580 = vunpack.c.l.s4 1983009808
        %v1581 = vunpack.c.0.s8 %v1580
        %v1582 = vlaneseq
        %v1583 = vshrl.u32 %v1582, 7
        %v1584 = vsub.s32 %v1581, %v1583
        %v1585 = vrot.slane %v1571, %v1584
        %v1586 = vcombine.high %v1578, %v1578
        %v1587 = vcombine.high %v1252, %v1252
        %v1589 = vunpack.c.l.s4 1983009808
        %v1590 = vunpack.c.0.s8 %v1589
        %v1591 = vlaneseq
        %v1592 = vshrl.u32 %v1591, 7
        %v1593 = vsub.s32 %v1590, %v1592
        %v1594 = vrot.slane %v1252, %v1593
        %v1596 = vunpack.c.l.s4 1983009808
        %v1597 = vunpack.c.0.s8 %v1596
        %v1598 = vlaneseq
        %v1599 = vshrl.u32 %v1598, 7
        %v1600 = vsub.s32 %v1597, %v1599
        %v1601 = vrot.slane %v1587, %v1600
        %v1602 = vcombine.high %v1594, %v1594
        %v1603 = vcombine.high %v1601, %v1601
        %v1604 = vcombine.high %v1253, %v1253
        %v1606 = vunpack.c.l.s4 1983009808
        %v1607 = vunpack.c.0.s8 %v1606
        %v1608 = vlaneseq
        %v1609 = vshrl.u32 %v1608, 7
        %v1610 = vsub.s32 %v1607, %v1609
        %v1611 = vrot.slane %v1253, %v1610
        %v1613 = vunpack.c.l.s4 1983009808
        %v1614 = vunpack.c.0.s8 %v1613
        %v1615 = vlaneseq
        %v1616 = vshrl.u32 %v1615, 7
        %v1617 = vsub.s32 %v1614, %v1616
        %v1618 = vrot.slane %v1604, %v1617
        %v1619 = vcombine.high %v1611, %v1611
        %v1620 = vcombine.high %v1254, %v1254
        %v1622 = vunpack.c.l.s4 1983009808
        %v1623 = vunpack.c.0.s8 %v1622
        %v1624 = vlaneseq
        %v1625 = vshrl.u32 %v1624, 7
        %v1626 = vsub.s32 %v1623, %v1625
        %v1627 = vrot.slane %v1254, %v1626
        %v1629 = vunpack.c.l.s4 1983009808
        %v1630 = vunpack.c.0.s8 %v1629
        %v1631 = vlaneseq
        %v1632 = vshrl.u32 %v1631, 7
        %v1633 = vsub.s32 %v1630, %v1632
        %v1634 = vrot.slane %v1620, %v1633
        %v1635 = vcombine.high %v1627, %v1627
        %v1636 = vcombine.high %v1634, %v1634
        %v1637 = vcombine.high %v1255, %v1255
        %v1639 = vunpack.c.l.s4 1983009808
        %v1640 = vunpack.c.0.s8 %v1639
        %v1641 = vlaneseq
        %v1642 = vshrl.u32 %v1641, 7
        %v1643 = vsub.s32 %v1640, %v1642
        %v1644 = vrot.slane %v1255, %v1643
        %v1646 = vunpack.c.l.s4 1983009808
        %v1647 = vunpack.c.0.s8 %v1646
        %v1648 = vlaneseq
        %v1649 = vshrl.u32 %v1648, 7
        %v1650 = vsub.s32 %v1647, %v1649
        %v1651 = vrot.slane %v1637, %v1650
        %v1652 = vcombine.high %v1644, %v1644
        %v1653 = vcombine.high %v1256, %v1256
        %v1655 = vunpack.c.l.s4 1983009808
        %v1656 = vunpack.c.0.s8 %v1655
        %v1657 = vlaneseq
        %v1658 = vshrl.u32 %v1657, 7
        %v1659 = vsub.s32 %v1656, %v1658
        %v1660 = vrot.slane %v1256, %v1659
        %v1662 = vunpack.c.l.s4 1983009808
        %v1663 = vunpack.c.0.s8 %v1662
        %v1664 = vlaneseq
        %v1665 = vshrl.u32 %v1664, 7
        %v1666 = vsub.s32 %v1663, %v1665
        %v1667 = vrot.slane %v1653, %v1666
        %v1668 = vcombine.high %v1660, %v1660
        %v1669 = vcombine.high %v1667, %v1667
        %v1670 = vcombine.high %v1257, %v1257
        %v1672 = vunpack.c.l.s4 1983009808
        %v1673 = vunpack.c.0.s8 %v1672
        %v1674 = vlaneseq
        %v1675 = vshrl.u32 %v1674, 7
        %v1676 = vsub.s32 %v1673, %v1675
        %v1677 = vrot.slane %v1257, %v1676
        %v1679 = vunpack.c.l.s4 1983009808
        %v1680 = vunpack.c.0.s8 %v1679
        %v1681 = vlaneseq
        %v1682 = vshrl.u32 %v1681, 7
        %v1683 = vsub.s32 %v1680, %v1682
        %v1684 = vrot.slane %v1670, %v1683
        %v1685 = vcombine.high %v1677, %v1677
        %v1686 = vcombine.high %v1258, %v1258
        %v1688 = vunpack.c.l.s4 1983009808
        %v1689 = vunpack.c.0.s8 %v1688
        %v1690 = vlaneseq
        %v1691 = vshrl.u32 %v1690, 7
        %v1692 = vsub.s32 %v1689, %v1691
        %v1693 = vrot.slane %v1258, %v1692
        %v1695 = vunpack.c.l.s4 1983009808
        %v1696 = vunpack.c.0.s8 %v1695
        %v1697 = vlaneseq
        %v1698 = vshrl.u32 %v1697, 7
        %v1699 = vsub.s32 %v1696, %v1698
        %v1700 = vrot.slane %v1686, %v1699
        %v1701 = vcombine.high %v1693, %v1693
        %v1702 = vcombine.high %v1700, %v1700
        %v1703 = vcombine.high %v1259, %v1259
        %v1705 = vunpack.c.l.s4 1983009808
        %v1706 = vunpack.c.0.s8 %v1705
        %v1707 = vlaneseq
        %v1708 = vshrl.u32 %v1707, 7
        %v1709 = vsub.s32 %v1706, %v1708
        %v1710 = vrot.slane %v1259, %v1709
        %v1712 = vunpack.c.l.s4 1983009808
        %v1713 = vunpack.c.0.s8 %v1712
        %v1714 = vlaneseq
        %v1715 = vshrl.u32 %v1714, 7
        %v1716 = vsub.s32 %v1713, %v1715
        %v1717 = vrot.slane %v1703, %v1716
        %v1718 = vcombine.high %v1710, %v1710
        %v1719 = vcombine.high %v1260, %v1260
        %v1721 = vunpack.c.l.s4 1983009808
        %v1722 = vunpack.c.0.s8 %v1721
        %v1723 = vlaneseq
        %v1724 = vshrl.u32 %v1723, 7
        %v1725 = vsub.s32 %v1722, %v1724
        %v1726 = vrot.slane %v1260, %v1725
        %v1728 = vunpack.c.l.s4 1983009808
        %v1729 = vunpack.c.0.s8 %v1728
        %v1730 = vlaneseq
        %v1731 = vshrl.u32 %v1730, 7
        %v1732 = vsub.s32 %v1729, %v1731
        %v1733 = vrot.slane %v1719, %v1732
        %v1734 = vcombine.high %v1726, %v1726
        %v1735 = vcombine.high %v1733, %v1733
        %v1736 = vcombine.high %v1261, %v1261
        %v1738 = vunpack.c.l.s4 1983009808
        %v1739 = vunpack.c.0.s8 %v1738
        %v1740 = vlaneseq
        %v1741 = vshrl.u32 %v1740, 7
        %v1742 = vsub.s32 %v1739, %v1741
        %v1743 = vrot.slane %v1261, %v1742
        %v1745 = vunpack.c.l.s4 1983009808
        %v1746 = vunpack.c.0.s8 %v1745
        %v1747 = vlaneseq
        %v1748 = vshrl.u32 %v1747, 7
        %v1749 = vsub.s32 %v1746, %v1748
        %v1750 = vrot.slane %v1736, %v1749
        %v1751 = vcombine.high %v1743, %v1743
        %v1752 = vcombine.low %v1297, %v1305
        %v1753 = vcombine.low %v1304, %v1306
        %v1755 = vunpack.c.l.s4 1983009808
        %v1756 = vunpack.c.0.s8 %v1755
        %v1757 = vlaneseq
        %v1758 = vshrl.u32 %v1757, 7
        %v1759 = vsub.s32 %v1756, %v1758
        %v1760 = vrot.slane %v1752, %v1759
        %v1762 = vunpack.c.l.s4 1983009808
        %v1763 = vunpack.c.0.s8 %v1762
        %v1764 = vlaneseq
        %v1765 = vshrl.u32 %v1764, 7
        %v1766 = vsub.s32 %v1763, %v1765
        %v1767 = vrot.slane %v1753, %v1766
        %v1768 = vcombine.low %v1760, %v1767
        %v1769 = vcombine.low %v1314, %v1322
        %v1770 = vcombine.low %v1321, %v1330
        %v1772 = vunpack.c.l.s4 1983009808
        %v1773 = vunpack.c.0.s8 %v1772
        %v1774 = vlaneseq
        %v1775 = vshrl.u32 %v1774, 7
        %v1776 = vsub.s32 %v1773, %v1775
        %v1777 = vrot.slane %v1769, %v1776
        %v1779 = vunpack.c.l.s4 1983009808
        %v1780 = vunpack.c.0.s8 %v1779
        %v1781 = vlaneseq
        %v1782 = vshrl.u32 %v1781, 7
        %v1783 = vsub.s32 %v1780, %v1782
        %v1784 = vrot.slane %v1770, %v1783
        %v1785 = vcombine.low %v1777, %v1784
        %v1786 = vcombine.low %v1338, %v1337
        %v1787 = vcombine.low %v1339, %v1347
        %v1789 = vunpack.c.l.s4 1983009808
        %v1790 = vunpack.c.0.s8 %v1789
        %v1791 = vlaneseq
        %v1792 = vshrl.u32 %v1791, 7
        %v1793 = vsub.s32 %v1790, %v1792
        %v1794 = vrot.slane %v1786, %v1793
        %v1796 = vunpack.c.l.s4 1983009808
        %v1797 = vunpack.c.0.s8 %v1796
        %v1798 = vlaneseq
        %v1799 = vshrl.u32 %v1798, 7
        %v1800 = vsub.s32 %v1797, %v1799
        %v1801 = vrot.slane %v1787, %v1800
        %v1802 = vcombine.low %v1794, %v1801
        %v1803 = vcombine.low %v1355, %v1354
        %v1804 = vcombine.low %v1363, %v1371
        %v1806 = vunpack.c.l.s4 1983009808
        %v1807 = vunpack.c.0.s8 %v1806
        %v1808 = vlaneseq
        %v1809 = vshrl.u32 %v1808, 7
        %v1810 = vsub.s32 %v1807, %v1809
        %v1811 = vrot.slane %v1803, %v1810
        %v1813 = vunpack.c.l.s4 1983009808
        %v1814 = vunpack.c.0.s8 %v1813
        %v1815 = vlaneseq
        %v1816 = vshrl.u32 %v1815, 7
        %v1817 = vsub.s32 %v1814, %v1816
        %v1818 = vrot.slane %v1804, %v1817
        %v1819 = vcombine.low %v1811, %v1818
        %v1820 = vcombine.low %v1370, %v1372
        %v1821 = vcombine.low %v1380, %v1388
        %v1823 = vunpack.c.l.s4 1983009808
        %v1824 = vunpack.c.0.s8 %v1823
        %v1825 = vlaneseq
        %v1826 = vshrl.u32 %v1825, 7
        %v1827 = vsub.s32 %v1824, %v1826
        %v1828 = vrot.slane %v1820, %v1827
        %v1830 = vunpack.c.l.s4 1983009808
        %v1831 = vunpack.c.0.s8 %v1830
        %v1832 = vlaneseq
        %v1833 = vshrl.u32 %v1832, 7
        %v1834 = vsub.s32 %v1831, %v1833
        %v1835 = vrot.slane %v1821, %v1834
        %v1836 = vcombine.low %v1828, %v1835
        %v1837 = vcombine.low %v1387, %v1396
        %v1838 = vcombine.low %v1404, %v1403
        %v1840 = vunpack.c.l.s4 1983009808
        %v1841 = vunpack.c.0.s8 %v1840
        %v1842 = vlaneseq
        %v1843 = vshrl.u32 %v1842, 7
        %v1844 = vsub.s32 %v1841, %v1843
        %v1845 = vrot.slane %v1837, %v1844
        %v1847 = vunpack.c.l.s4 1983009808
        %v1848 = vunpack.c.0.s8 %v1847
        %v1849 = vlaneseq
        %v1850 = vshrl.u32 %v1849, 7
        %v1851 = vsub.s32 %v1848, %v1850
        %v1852 = vrot.slane %v1838, %v1851
        %v1853 = vcombine.low %v1845, %v1852
        %v1854 = vcombine.low %v1405, %v1413
        %v1855 = vcombine.low %v1421, %v1420
        %v1857 = vunpack.c.l.s4 1983009808
        %v1858 = vunpack.c.0.s8 %v1857
        %v1859 = vlaneseq
        %v1860 = vshrl.u32 %v1859, 7
        %v1861 = vsub.s32 %v1858, %v1860
        %v1862 = vrot.slane %v1854, %v1861
        %v1864 = vunpack.c.l.s4 1983009808
        %v1865 = vunpack.c.0.s8 %v1864
        %v1866 = vlaneseq
        %v1867 = vshrl.u32 %v1866, 7
        %v1868 = vsub.s32 %v1865, %v1867
        %v1869 = vrot.slane %v1855, %v1868
        %v1870 = vcombine.low %v1862, %v1869
        %v1871 = vcombine.low %v1429, %v1437
        %v1872 = vcombine.low %v1436, %v1438
        %v1874 = vunpack.c.l.s4 1983009808
        %v1875 = vunpack.c.0.s8 %v1874
        %v1876 = vlaneseq
        %v1877 = vshrl.u32 %v1876, 7
        %v1878 = vsub.s32 %v1875, %v1877
        %v1879 = vrot.slane %v1871, %v1878
        %v1881 = vunpack.c.l.s4 1983009808
        %v1882 = vunpack.c.0.s8 %v1881
        %v1883 = vlaneseq
        %v1884 = vshrl.u32 %v1883, 7
        %v1885 = vsub.s32 %v1882, %v1884
        %v1886 = vrot.slane %v1872, %v1885
        %v1887 = vcombine.low %v1879, %v1886
        %v1888 = vcombine.low %v1446, %v1454
        %v1889 = vcombine.low %v1453, %v1462
        %v1891 = vunpack.c.l.s4 1983009808
        %v1892 = vunpack.c.0.s8 %v1891
        %v1893 = vlaneseq
        %v1894 = vshrl.u32 %v1893, 7
        %v1895 = vsub.s32 %v1892, %v1894
        %v1896 = vrot.slane %v1888, %v1895
        %v1898 = vunpack.c.l.s4 1983009808
        %v1899 = vunpack.c.0.s8 %v1898
        %v1900 = vlaneseq
        %v1901 = vshrl.u32 %v1900, 7
        %v1902 = vsub.s32 %v1899, %v1901
        %v1903 = vrot.slane %v1889, %v1902
        %v1904 = vcombine.low %v1896, %v1903
        %v1905 = vcombine.low %v1470, %v1469
        %v1906 = vcombine.low %v1471, %v1479
        %v1908 = vunpack.c.l.s4 1983009808
        %v1909 = vunpack.c.0.s8 %v1908
        %v1910 = vlaneseq
        %v1911 = vshrl.u32 %v1910, 7
        %v1912 = vsub.s32 %v1909, %v1911
        %v1913 = vrot.slane %v1905, %v1912
        %v1915 = vunpack.c.l.s4 1983009808
        %v1916 = vunpack.c.0.s8 %v1915
        %v1917 = vlaneseq
        %v1918 = vshrl.u32 %v1917, 7
        %v1919 = vsub.s32 %v1916, %v1918
        %v1920 = vrot.slane %v1906, %v1919
        %v1921 = vcombine.low %v1913, %v1920
        %v1922 = vcombine.low %v1487, %v1486
        %v1923 = vcombine.low %v1495, %v1503
        %v1925 = vunpack.c.l.s4 1983009808
        %v1926 = vunpack.c.0.s8 %v1925
        %v1927 = vlaneseq
        %v1928 = vshrl.u32 %v1927, 7
        %v1929 = vsub.s32 %v1926, %v1928
        %v1930 = vrot.slane %v1922, %v1929
        %v1932 = vunpack.c.l.s4 1983009808
        %v1933 = vunpack.c.0.s8 %v1932
        %v1934 = vlaneseq
        %v1935 = vshrl.u32 %v1934, 7
        %v1936 = vsub.s32 %v1933, %v1935
        %v1937 = vrot.slane %v1923, %v1936
        %v1938 = vcombine.low %v1930, %v1937
        %v1939 = vcombine.low %v1502, %v1504
        %v1940 = vcombine.low %v1512, %v1520
        %v1942 = vunpack.c.l.s4 1983009808
        %v1943 = vunpack.c.0.s8 %v1942
        %v1944 = vlaneseq
        %v1945 = vshrl.u32 %v1944, 7
        %v1946 = vsub.s32 %v1943, %v1945
        %v1947 = vrot.slane %v1939, %v1946
        %v1949 = vunpack.c.l.s4 1983009808
        %v1950 = vunpack.c.0.s8 %v1949
        %v1951 = vlaneseq
        %v1952 = vshrl.u32 %v1951, 7
        %v1953 = vsub.s32 %v1950, %v1952
        %v1954 = vrot.slane %v1940, %v1953
        %v1955 = vcombine.low %v1947, %v1954
        %v1956 = vcombine.low %v1519, %v1528
        %v1957 = vcombine.low %v1536, %v1535
        %v1959 = vunpack.c.l.s4 1983009808
        %v1960 = vunpack.c.0.s8 %v1959
        %v1961 = vlaneseq
        %v1962 = vshrl.u32 %v1961, 7
        %v1963 = vsub.s32 %v1960, %v1962
        %v1964 = vrot.slane %v1956, %v1963
        %v1966 = vunpack.c.l.s4 1983009808
        %v1967 = vunpack.c.0.s8 %v1966
        %v1968 = vlaneseq
        %v1969 = vshrl.u32 %v1968, 7
        %v1970 = vsub.s32 %v1967, %v1969
        %v1971 = vrot.slane %v1957, %v1970
        %v1972 = vcombine.low %v1964, %v1971
        %v1973 = vcombine.low %v1537, %v1545
        %v1974 = vcombine.low %v1553, %v1552
        %v1976 = vunpack.c.l.s4 1983009808
        %v1977 = vunpack.c.0.s8 %v1976
        %v1978 = vlaneseq
        %v1979 = vshrl.u32 %v1978, 7
        %v1980 = vsub.s32 %v1977, %v1979
        %v1981 = vrot.slane %v1973, %v1980
        %v1983 = vunpack.c.l.s4 1983009808
        %v1984 = vunpack.c.0.s8 %v1983
        %v1985 = vlaneseq
        %v1986 = vshrl.u32 %v1985, 7
        %v1987 = vsub.s32 %v1984, %v1986
        %v1988 = vrot.slane %v1974, %v1987
        %v1989 = vcombine.low %v1981, %v1988
        %v1990 = vcombine.low %v1561, %v1569
        %v1991 = vcombine.low %v1568, %v1570
        %v1993 = vunpack.c.l.s4 1983009808
        %v1994 = vunpack.c.0.s8 %v1993
        %v1995 = vlaneseq
        %v1996 = vshrl.u32 %v1995, 7
        %v1997 = vsub.s32 %v1994, %v1996
        %v1998 = vrot.slane %v1990, %v1997
        %v2000 = vunpack.c.l.s4 1983009808
        %v2001 = vunpack.c.0.s8 %v2000
        %v2002 = vlaneseq
        %v2003 = vshrl.u32 %v2002, 7
        %v2004 = vsub.s32 %v2001, %v2003
        %v2005 = vrot.slane %v1991, %v2004
        %v2006 = vcombine.low %v1998, %v2005
        %v2007 = vcombine.low %v1578, %v1586
        %v2008 = vcombine.low %v1585, %v1594
        %v2010 = vunpack.c.l.s4 1983009808
        %v2011 = vunpack.c.0.s8 %v2010
        %v2012 = vlaneseq
        %v2013 = vshrl.u32 %v2012, 7
        %v2014 = vsub.s32 %v2011, %v2013
        %v2015 = vrot.slane %v2007, %v2014
        %v2017 = vunpack.c.l.s4 1983009808
        %v2018 = vunpack.c.0.s8 %v2017
        %v2019 = vlaneseq
        %v2020 = vshrl.u32 %v2019, 7
        %v2021 = vsub.s32 %v2018, %v2020
        %v2022 = vrot.slane %v2008, %v2021
        %v2023 = vcombine.low %v2015, %v2022
        %v2024 = vcombine.low %v1602, %v1601
        %v2025 = vcombine.low %v1603, %v1611
        %v2027 = vunpack.c.l.s4 1983009808
        %v2028 = vunpack.c.0.s8 %v2027
        %v2029 = vlaneseq
        %v2030 = vshrl.u32 %v2029, 7
        %v2031 = vsub.s32 %v2028, %v2030
        %v2032 = vrot.slane %v2024, %v2031
        %v2034 = vunpack.c.l.s4 1983009808
        %v2035 = vunpack.c.0.s8 %v2034
        %v2036 = vlaneseq
        %v2037 = vshrl.u32 %v2036, 7
        %v2038 = vsub.s32 %v2035, %v2037
        %v2039 = vrot.slane %v2025, %v2038
        %v2040 = vcombine.low %v2032, %v2039
        %v2041 = vcombine.low %v1619, %v1618
        %v2042 = vcombine.low %v1627, %v1635
        %v2044 = vunpack.c.l.s4 1983009808
        %v2045 = vunpack.c.0.s8 %v2044
        %v2046 = vlaneseq
        %v2047 = vshrl.u32 %v2046, 7
        %v2048 = vsub.s32 %v2045, %v2047
        %v2049 = vrot.slane %v2041, %v2048
        %v2051 = vunpack.c.l.s4 1983009808
        %v2052 = vunpack.c.0.s8 %v2051
        %v2053 = vlaneseq
        %v2054 = vshrl.u32 %v2053, 7
        %v2055 = vsub.s32 %v2052, %v2054
        %v2056 = vrot.slane %v2042, %v2055
        %v2057 = vcombine.low %v2049, %v2056
        %v2058 = vcombine.low %v1634, %v1636
        %v2059 = vcombine.low %v1644, %v1652
        %v2061 = vunpack.c.l.s4 1983009808
        %v2062 = vunpack.c.0.s8 %v2061
        %v2063 = vlaneseq
        %v2064 = vshrl.u32 %v2063, 7
        %v2065 = vsub.s32 %v2062, %v2064
        %v2066 = vrot.slane %v2058, %v2065
        %v2068 = vunpack.c.l.s4 1983009808
        %v2069 = vunpack.c.0.s8 %v2068
        %v2070 = vlaneseq
        %v2071 = vshrl.u32 %v2070, 7
        %v2072 = vsub.s32 %v2069, %v2071
        %v2073 = vrot.slane %v2059, %v2072
        %v2074 = vcombine.low %v2066, %v2073
        %v2075 = vcombine.low %v1651, %v1660
        %v2076 = vcombine.low %v1668, %v1667
        %v2078 = vunpack.c.l.s4 1983009808
        %v2079 = vunpack.c.0.s8 %v2078
        %v2080 = vlaneseq
        %v2081 = vshrl.u32 %v2080, 7
        %v2082 = vsub.s32 %v2079, %v2081
        %v2083 = vrot.slane %v2075, %v2082
        %v2085 = vunpack.c.l.s4 1983009808
        %v2086 = vunpack.c.0.s8 %v2085
        %v2087 = vlaneseq
        %v2088 = vshrl.u32 %v2087, 7
        %v2089 = vsub.s32 %v2086, %v2088
        %v2090 = vrot.slane %v2076, %v2089
        %v2091 = vcombine.low %v2083, %v2090
        %v2092 = vcombine.low %v1669, %v1677
        %v2093 = vcombine.low %v1685, %v1684
        %v2095 = vunpack.c.l.s4 1983009808
        %v2096 = vunpack.c.0.s8 %v2095
        %v2097 = vlaneseq
        %v2098 = vshrl.u32 %v2097, 7
        %v2099 = vsub.s32 %v2096, %v2098
        %v2100 = vrot.slane %v2092, %v2099
        %v2102 = vunpack.c.l.s4 1983009808
        %v2103 = vunpack.c.0.s8 %v2102
        %v2104 = vlaneseq
        %v2105 = vshrl.u32 %v2104, 7
        %v2106 = vsub.s32 %v2103, %v2105
        %v2107 = vrot.slane %v2093, %v2106
        %v2108 = vcombine.low %v2100, %v2107
        %v2109 = vcombine.low %v1693, %v1701
        %v2110 = vcombine.low %v1700, %v1702
        %v2112 = vunpack.c.l.s4 1983009808
        %v2113 = vunpack.c.0.s8 %v2112
        %v2114 = vlaneseq
        %v2115 = vshrl.u32 %v2114, 7
        %v2116 = vsub.s32 %v2113, %v2115
        %v2117 = vrot.slane %v2109, %v2116
        %v2119 = vunpack.c.l.s4 1983009808
        %v2120 = vunpack.c.0.s8 %v2119
        %v2121 = vlaneseq
        %v2122 = vshrl.u32 %v2121, 7
        %v2123 = vsub.s32 %v2120, %v2122
        %v2124 = vrot.slane %v2110, %v2123
        %v2125 = vcombine.low %v2117, %v2124
        %v2126 = vcombine.low %v1710, %v1718
        %v2127 = vcombine.low %v1717, %v1726
        %v2129 = vunpack.c.l.s4 1983009808
        %v2130 = vunpack.c.0.s8 %v2129
        %v2131 = vlaneseq
        %v2132 = vshrl.u32 %v2131, 7
        %v2133 = vsub.s32 %v2130, %v2132
        %v2134 = vrot.slane %v2126, %v2133
        %v2136 = vunpack.c.l.s4 1983009808
        %v2137 = vunpack.c.0.s8 %v2136
        %v2138 = vlaneseq
        %v2139 = vshrl.u32 %v2138, 7
        %v2140 = vsub.s32 %v2137, %v2139
        %v2141 = vrot.slane %v2127, %v2140
        %v2142 = vcombine.low %v2134, %v2141
        %v2143 = vcombine.low %v1734, %v1733
        %v2144 = vcombine.low %v1735, %v1743
        %v2146 = vunpack.c.l.s4 1983009808
        %v2147 = vunpack.c.0.s8 %v2146
        %v2148 = vlaneseq
        %v2149 = vshrl.u32 %v2148, 7
        %v2150 = vsub.s32 %v2147, %v2149
        %v2151 = vrot.slane %v2143, %v2150
        %v2153 = vunpack.c.l.s4 1983009808
        %v2154 = vunpack.c.0.s8 %v2153
        %v2155 = vlaneseq
        %v2156 = vshrl.u32 %v2155, 7
        %v2157 = vsub.s32 %v2154, %v2156
        %v2158 = vrot.slane %v2144, %v2157
        %v2159 = vcombine.low %v2151, %v2158
        %v2160 = vcombine.low %v1751, %v1750
        %v2162 = vunpack.c.l.s4 1983009808
        %v2163 = vunpack.c.0.s8 %v2162
        %v2164 = vlaneseq
        %v2165 = vshrl.u32 %v2164, 7
        %v2166 = vsub.s32 %v2163, %v2165
        %v2167 = vrot.slane %v2160, %v2166
        %v2193 = vpack.c.bf16 %v1785, %v1768
        %v2194 = vpack.c.bf16 %v1819, %v1802
        %v2195 = vpack.c.bf16 %v1853, %v1836
        %v2196 = vpack.c.bf16 %v1887, %v1870
        %v2197 = vpack.c.bf16 %v1921, %v1904
        %v2198 = vpack.c.bf16 %v1955, %v1938
        %v2199 = vpack.c.bf16 %v1989, %v1972
        %v2200 = vpack.c.bf16 %v2023, %v2006
        %v2201 = vpack.c.bf16 %v2057, %v2040
        %v2202 = vpack.c.bf16 %v2091, %v2074
        %v2203 = vpack.c.bf16 %v2125, %v2108
        %v2204 = vpack.c.bf16 %v2159, %v2142
        %v2205 = vpack.c.bf16 %v2167, %v2167
        %v2206 = vld [vmem:[%s1] sm:$0xf]
        %v2207 = vld [vmem:[%s1 + $0x4] sm:$0xf]
        %v2208 = vld [vmem:[%s1 + $0x8] sm:$0xf]
        %v2209 = vld [vmem:[%s1 + $0xc] sm:$0xf]
        %v2210 = vld [vmem:[%s1 + $0x10] sm:$0x3]
        %v2216 = vunpack.c.l.b16 %v2206
        %v2217 = vunpack.c.l.b16 %v2207
        %v2218 = vunpack.c.l.b16 %v2208
        %v2219 = vunpack.c.l.b16 %v2209
        %v2220 = vunpack.c.l.b16 %v2210
        %v2221 = vpack.c.b16 %v2217, %v2216
        %v2222 = vpack.c.b16 %v2219, %v2218
        %v2223 = vpack.c.b16 %v2220, %v2220
        %vm2226 = vcmask 293888
        %v2228 = vsel %vm2226, %v2193, 0
        %v2231 = vsel %vm2226, %v2194, 0
        %v2234 = vsel %vm2226, %v2195, 0
        %v2237 = vsel %vm2226, %v2196, 0
        %v2240 = vsel %vm2226, %v2197, 0
        %v2243 = vsel %vm2226, %v2198, 0
        %v2246 = vsel %vm2226, %v2199, 0
        %v2249 = vsel %vm2226, %v2200, 0
        %v2252 = vsel %vm2226, %v2201, 0
        %v2255 = vsel %vm2226, %v2202, 0
        %v2258 = vsel %vm2226, %v2203, 0
        %v2261 = vsel %vm2226, %v2204, 0
        %v2264 = vsel %vm2226, %v2205, 0
        %vm2266 = vcmask 1041408
        %v2268 = vsel %vm2266, %v2223, 0
        %2270 = vmatprep.subr.bf16.mxu0 0
        %2271 = vmatpush1.bf16.msra.mxu0 0
        %2272 = vmatprep.subr.bf16.mxu0 0
        %2273 = vmatpush1.bf16.msra.mxu0 0
        %2274 = vmatprep.subr.bf16.mxu0 0
        %2275 = vmatpush1.bf16.msra.mxu0 0
        %2276 = vmatprep.subr.bf16.mxu0 0
        %2277 = vmatpush1.bf16.msra.mxu0 0
        %2278 = vmatprep.subr.bf16.mxu0 0
        %2279 = vmatpush1.bf16.msra.mxu0 0
        %2280 = vmatprep.subr.bf16.mxu0 0
        %2281 = vmatpush1.bf16.msra.mxu0 %v2268
        %2282 = vmatprep.subr.bf16.mxu0 0
        %2283 = vmatpush1.bf16.msra.mxu0 %v2222
        %2284 = vmatprep.subr.bf16.mxu0 0
        %2285 = vmatpush1.bf16.msra.mxu0 %v2221
        %2286 = vmatprep.subr.bf16.mxu0 0
        %2287 = vmatpush2.bf16.msra.mxu0 0
        %2288 = vmatprep.subr.bf16.mxu0 0
        %2289 = vmatpush2.bf16.msra.mxu0 0
        %2290 = vmatprep.subr.bf16.mxu0 0
        %2291 = vmatpush2.bf16.msra.mxu0 0
        %2292 = vmatprep.subr.bf16.mxu0 0
        %2293 = vmatpush2.bf16.msra.mxu0 0
        %2294 = vmatprep.subr.bf16.mxu0 0
        %2295 = vmatpush2.bf16.msra.mxu0 0
        %2296 = vmatprep.subr.bf16.mxu0 0
        %2297 = vmatpush2.bf16.msra.mxu0 0
        %2298 = vmatprep.subr.bf16.mxu0 0
        %2299 = vmatpush2.bf16.msra.mxu0 0
        %2300 = vmatprep.subr.bf16.mxu0 0
        %2301 = vmatpush2.bf16.msra.mxu0 0
        %2302 = vmatprep.mubr.bf16.mxu0 0
        %2303 = vmatmul.mubr.bf16.gmra.mxu0 %v2228
        %v2304 = vpop.f32.mrf.mxu0
        %v2305 = vadd.f32 0.0, %v2304
        %v2306 = vpop.f32.mrf.mxu0
        %v2307 = vpop.f32.mrf.mxu0
        %v2308 = vadd.f32 0.0, %v2307
        %v2309 = vpop.f32.mrf.mxu0
        %2310 = vmatprep.mubr.bf16.mxu0 0
        %2311 = vmatmul.mubr.bf16.gmra.mxu0 %v2231
        %v2312 = vpop.f32.mrf.mxu0
        %v2313 = vadd.f32 0.0, %v2312
        %v2314 = vpop.f32.mrf.mxu0
        %v2315 = vpop.f32.mrf.mxu0
        %v2316 = vadd.f32 0.0, %v2315
        %v2317 = vpop.f32.mrf.mxu0
        %2318 = vmatprep.mubr.bf16.mxu0 0
        %2319 = vmatmul.mubr.bf16.gmra.mxu0 %v2234
        %v2320 = vpop.f32.mrf.mxu0
        %v2321 = vadd.f32 0.0, %v2320
        %v2322 = vpop.f32.mrf.mxu0
        %v2323 = vpop.f32.mrf.mxu0
        %v2324 = vadd.f32 0.0, %v2323
        %v2325 = vpop.f32.mrf.mxu0
        %2326 = vmatprep.mubr.bf16.mxu0 0
        %2327 = vmatmul.mubr.bf16.gmra.mxu0 %v2237
        %v2328 = vpop.f32.mrf.mxu0
        %v2329 = vadd.f32 0.0, %v2328
        %v2330 = vpop.f32.mrf.mxu0
        %v2331 = vpop.f32.mrf.mxu0
        %v2332 = vadd.f32 0.0, %v2331
        %v2333 = vpop.f32.mrf.mxu0
        %2334 = vmatprep.mubr.bf16.mxu0 0
        %2335 = vmatmul.mubr.bf16.gmra.mxu0 %v2240
        %v2336 = vpop.f32.mrf.mxu0
        %v2337 = vadd.f32 0.0, %v2336
        %v2338 = vpop.f32.mrf.mxu0
        %v2339 = vpop.f32.mrf.mxu0
        %v2340 = vadd.f32 0.0, %v2339
        %v2341 = vpop.f32.mrf.mxu0
        %2342 = vmatprep.mubr.bf16.mxu0 0
        %2343 = vmatmul.mubr.bf16.gmra.mxu0 %v2243
        %v2344 = vpop.f32.mrf.mxu0
        %v2345 = vadd.f32 0.0, %v2344
        %v2346 = vpop.f32.mrf.mxu0
        %v2347 = vpop.f32.mrf.mxu0
        %v2348 = vadd.f32 0.0, %v2347
        %v2349 = vpop.f32.mrf.mxu0
        %2350 = vmatprep.mubr.bf16.mxu0 0
        %2351 = vmatmul.mubr.bf16.gmra.mxu0 %v2246
        %v2352 = vpop.f32.mrf.mxu0
        %v2353 = vadd.f32 0.0, %v2352
        %v2354 = vpop.f32.mrf.mxu0
        %v2355 = vpop.f32.mrf.mxu0
        %v2356 = vadd.f32 0.0, %v2355
        %v2357 = vpop.f32.mrf.mxu0
        %2358 = vmatprep.mubr.bf16.mxu0 0
        %2359 = vmatmul.mubr.bf16.gmra.mxu0 %v2249
        %v2360 = vpop.f32.mrf.mxu0
        %v2361 = vadd.f32 0.0, %v2360
        %v2362 = vpop.f32.mrf.mxu0
        %v2363 = vpop.f32.mrf.mxu0
        %v2364 = vadd.f32 0.0, %v2363
        %v2365 = vpop.f32.mrf.mxu0
        %2366 = vmatprep.mubr.bf16.mxu0 0
        %2367 = vmatmul.mubr.bf16.gmra.mxu0 %v2252
        %v2368 = vpop.f32.mrf.mxu0
        %v2369 = vadd.f32 0.0, %v2368
        %v2370 = vpop.f32.mrf.mxu0
        %v2371 = vpop.f32.mrf.mxu0
        %v2372 = vadd.f32 0.0, %v2371
        %v2373 = vpop.f32.mrf.mxu0
        %2374 = vmatprep.mubr.bf16.mxu0 0
        %2375 = vmatmul.mubr.bf16.gmra.mxu0 %v2255
        %v2376 = vpop.f32.mrf.mxu0
        %v2377 = vadd.f32 0.0, %v2376
        %v2378 = vpop.f32.mrf.mxu0
        %v2379 = vpop.f32.mrf.mxu0
        %v2380 = vadd.f32 0.0, %v2379
        %v2381 = vpop.f32.mrf.mxu0
        %2382 = vmatprep.mubr.bf16.mxu0 0
        %2383 = vmatmul.mubr.bf16.gmra.mxu0 %v2258
        %v2384 = vpop.f32.mrf.mxu0
        %v2385 = vadd.f32 0.0, %v2384
        %v2386 = vpop.f32.mrf.mxu0
        %v2387 = vpop.f32.mrf.mxu0
        %v2388 = vadd.f32 0.0, %v2387
        %v2389 = vpop.f32.mrf.mxu0
        %2390 = vmatprep.mubr.bf16.mxu0 0
        %2391 = vmatmul.mubr.bf16.gmra.mxu0 %v2261
        %v2392 = vpop.f32.mrf.mxu0
        %v2393 = vadd.f32 0.0, %v2392
        %v2394 = vpop.f32.mrf.mxu0
        %v2395 = vpop.f32.mrf.mxu0
        %v2396 = vadd.f32 0.0, %v2395
        %v2397 = vpop.f32.mrf.mxu0
        %2398 = vmatprep.mubr.bf16.mxu0 0
        %2399 = vmatmul.mubr.bf16.gmra.mxu0 %v2264
        %v2400 = vpop.f32.mrf.mxu0
        %v2401 = vadd.f32 0.0, %v2400
        %v2402 = vpop.f32.mrf.mxu0
        %v2403 = vpop.f32.mrf.mxu0
        %v2404 = vpop.f32.mrf.mxu0
        %2405 = vdwg.mxu0
        %p2406 = scmp.eq.s32.totalorder %s18, 0
        // Predicated region
        $region29: #{tpu_custom_call.1} parent=27 // pred_check
          %p2407 = pneg %p2406
        $region30: #{tpu_custom_call.1} parent=27 // pred_check_branch
          %2409 = sbr.rel (%p2407) target = $region32
        $region31: #{tpu_custom_call.1} parent=27 // pred_region
          %vm2410 = vcmask 57344
          %2411 = vst.msk [vmem:[#allocation2] sm:$0x1] %vm2410, 0.0
          %2412 = vst.msk [vmem:[#allocation4] sm:$0x1] %vm2410, 0.0
        $region32: #{tpu_custom_call.1} parent=27 // pred_fallthru
          _
        %v2413 = vld [vmem:[#allocation2] sm:$0x1]
        %v2414 = vsel %vm1059, %v2305, 0.0
        %v2415 = vsel %vm1059, %v2308, 0.0
        %v2416 = vadd.f32 %v2414, %v2415
        %v2417 = vsel %vm1059, %v2313, 0.0
        %v2418 = vadd.f32 %v2416, %v2417
        %v2419 = vsel %vm1059, %v2316, 0.0
        %v2420 = vadd.f32 %v2418, %v2419
        %v2421 = vsel %vm1059, %v2321, 0.0
        %v2422 = vadd.f32 %v2420, %v2421
        %v2423 = vsel %vm1059, %v2324, 0.0
        %v2424 = vadd.f32 %v2422, %v2423
        %v2425 = vsel %vm1059, %v2329, 0.0
        %v2426 = vadd.f32 %v2424, %v2425
        %v2427 = vsel %vm1059, %v2332, 0.0
        %v2428 = vadd.f32 %v2426, %v2427
        %v2429 = vsel %vm1059, %v2337, 0.0
        %v2430 = vadd.f32 %v2428, %v2429
        %v2431 = vsel %vm1059, %v2340, 0.0
        %v2432 = vadd.f32 %v2430, %v2431
        %v2433 = vsel %vm1059, %v2345, 0.0
        %v2434 = vadd.f32 %v2432, %v2433
        %v2435 = vsel %vm1059, %v2348, 0.0
        %v2436 = vadd.f32 %v2434, %v2435
        %v2437 = vsel %vm1059, %v2353, 0.0
        %v2438 = vadd.f32 %v2436, %v2437
        %v2439 = vsel %vm1059, %v2356, 0.0
        %v2440 = vadd.f32 %v2438, %v2439
        %v2441 = vsel %vm1059, %v2361, 0.0
        %v2442 = vadd.f32 %v2440, %v2441
        %v2443 = vsel %vm1059, %v2364, 0.0
        %v2444 = vadd.f32 %v2442, %v2443
        %v2445 = vsel %vm1059, %v2369, 0.0
        %v2446 = vadd.f32 %v2444, %v2445
        %v2447 = vsel %vm1059, %v2372, 0.0
        %v2448 = vadd.f32 %v2446, %v2447
        %v2449 = vsel %vm1059, %v2377, 0.0
        %v2450 = vadd.f32 %v2448, %v2449
        %v2451 = vsel %vm1059, %v2380, 0.0
        %v2452 = vadd.f32 %v2450, %v2451
        %v2453 = vsel %vm1059, %v2385, 0.0
        %v2454 = vadd.f32 %v2452, %v2453
        %v2455 = vsel %vm1059, %v2388, 0.0
        %v2456 = vadd.f32 %v2454, %v2455
        %v2457 = vsel %vm1059, %v2393, 0.0
        %v2458 = vadd.f32 %v2456, %v2457
        %v2459 = vsel %vm1059, %v2396, 0.0
        %v2460 = vadd.f32 %v2458, %v2459
        %vm2461 = vcmask 60416
        %v2462 = vsel %vm2461, %v2401, 0.0
        %v2463 = vadd.f32 %v2460, %v2462
        %v2464 = vrot.slane %v2463, 4
        %v2465 = vadd.f32 %v2463, %v2464
        %v2466 = vrot.slane %v2465, 2
        %v2467 = vadd.f32 %v2465, %v2466
        %v2468 = vrot.slane %v2467, 1
        %v2469 = vadd.f32 %v2467, %v2468
        %v2470 = vadd.f32 %v2413, %v2469
        %vm2471 = vcmask 57344
        %2472 = vst.msk [vmem:[#allocation2] sm:$0x1] %vm2471, %v2470
        %v2473 = vld [vmem:[#allocation4] sm:$0x1]
        %v2474 = vmul.f32 %v2305, %v2305
        %v2475 = vmul.f32 %v2308, %v2308
        %v2476 = vmul.f32 %v2313, %v2313
        %v2477 = vmul.f32 %v2316, %v2316
        %v2478 = vmul.f32 %v2321, %v2321
        %v2479 = vmul.f32 %v2324, %v2324
        %v2480 = vmul.f32 %v2329, %v2329
        %v2481 = vmul.f32 %v2332, %v2332
        %v2482 = vmul.f32 %v2337, %v2337
        %v2483 = vmul.f32 %v2340, %v2340
        %v2484 = vmul.f32 %v2345, %v2345
        %v2485 = vmul.f32 %v2348, %v2348
        %v2486 = vmul.f32 %v2353, %v2353
        %v2487 = vmul.f32 %v2356, %v2356
        %v2488 = vmul.f32 %v2361, %v2361
        %v2489 = vmul.f32 %v2364, %v2364
        %v2490 = vmul.f32 %v2369, %v2369
        %v2491 = vmul.f32 %v2372, %v2372
        %v2492 = vmul.f32 %v2377, %v2377
        %v2493 = vmul.f32 %v2380, %v2380
        %v2494 = vmul.f32 %v2385, %v2385
        %v2495 = vmul.f32 %v2388, %v2388
        %v2496 = vmul.f32 %v2393, %v2393
        %v2497 = vmul.f32 %v2396, %v2396
        %v2498 = vmul.f32 %v2401, %v2401
        %v2499 = vsel %vm1059, %v2474, 0.0
        %v2500 = vsel %vm1059, %v2475, 0.0
        %v2501 = vadd.f32 %v2499, %v2500
        %v2502 = vsel %vm1059, %v2476, 0.0
        %v2503 = vadd.f32 %v2501, %v2502
        %v2504 = vsel %vm1059, %v2477, 0.0
        %v2505 = vadd.f32 %v2503, %v2504
        %v2506 = vsel %vm1059, %v2478, 0.0
        %v2507 = vadd.f32 %v2505, %v2506
        %v2508 = vsel %vm1059, %v2479, 0.0
        %v2509 = vadd.f32 %v2507, %v2508
        %v2510 = vsel %vm1059, %v2480, 0.0
        %v2511 = vadd.f32 %v2509, %v2510
        %v2512 = vsel %vm1059, %v2481, 0.0
        %v2513 = vadd.f32 %v2511, %v2512
        %v2514 = vsel %vm1059, %v2482, 0.0
        %v2515 = vadd.f32 %v2513, %v2514
        %v2516 = vsel %vm1059, %v2483, 0.0
        %v2517 = vadd.f32 %v2515, %v2516
        %v2518 = vsel %vm1059, %v2484, 0.0
        %v2519 = vadd.f32 %v2517, %v2518
        %v2520 = vsel %vm1059, %v2485, 0.0
        %v2521 = vadd.f32 %v2519, %v2520
        %v2522 = vsel %vm1059, %v2486, 0.0
        %v2523 = vadd.f32 %v2521, %v2522
        %v2524 = vsel %vm1059, %v2487, 0.0
        %v2525 = vadd.f32 %v2523, %v2524
        %v2526 = vsel %vm1059, %v2488, 0.0
        %v2527 = vadd.f32 %v2525, %v2526
        %v2528 = vsel %vm1059, %v2489, 0.0
        %v2529 = vadd.f32 %v2527, %v2528
        %v2530 = vsel %vm1059, %v2490, 0.0
        %v2531 = vadd.f32 %v2529, %v2530
        %v2532 = vsel %vm1059, %v2491, 0.0
        %v2533 = vadd.f32 %v2531, %v2532
        %v2534 = vsel %vm1059, %v2492, 0.0
        %v2535 = vadd.f32 %v2533, %v2534
        %v2536 = vsel %vm1059, %v2493, 0.0
        %v2537 = vadd.f32 %v2535, %v2536
        %v2538 = vsel %vm1059, %v2494, 0.0
        %v2539 = vadd.f32 %v2537, %v2538
        %v2540 = vsel %vm1059, %v2495, 0.0
        %v2541 = vadd.f32 %v2539, %v2540
        %v2542 = vsel %vm1059, %v2496, 0.0
        %v2543 = vadd.f32 %v2541, %v2542
        %v2544 = vsel %vm1059, %v2497, 0.0
        %v2545 = vadd.f32 %v2543, %v2544
        %v2546 = vsel %vm2461, %v2498, 0.0
        %v2547 = vadd.f32 %v2545, %v2546
        %v2548 = vrot.slane %v2547, 4
        %v2549 = vadd.f32 %v2547, %v2548
        %v2550 = vrot.slane %v2549, 2
        %v2551 = vadd.f32 %v2549, %v2550
        %v2552 = vrot.slane %v2551, 1
        %v2553 = vadd.f32 %v2551, %v2552
        %v2554 = vadd.f32 %v2473, %v2553
        %2555 = vst.msk [vmem:[#allocation4] sm:$0x1] %vm2471, %v2554
        %v2581 = vcombine.high %v2305, %v2305
        %v2583 = vunpack.c.l.s4 1983009808
        %v2584 = vunpack.c.0.s8 %v2583
        %v2585 = vlaneseq
        %v2586 = vshrl.u32 %v2585, 7
        %v2587 = vsub.s32 %v2584, %v2586
        %v2588 = vrot.slane %v2305, %v2587
        %v2590 = vunpack.c.l.s4 1983009808
        %v2591 = vunpack.c.0.s8 %v2590
        %v2592 = vlaneseq
        %v2593 = vshrl.u32 %v2592, 7
        %v2594 = vsub.s32 %v2591, %v2593
        %v2595 = vrot.slane %v2581, %v2594
        %v2596 = vcombine.high %v2588, %v2588
        %v2597 = vcombine.high %v2595, %v2595
        %v2598 = vcombine.high %v2308, %v2308
        %v2600 = vunpack.c.l.s4 1983009808
        %v2601 = vunpack.c.0.s8 %v2600
        %v2602 = vlaneseq
        %v2603 = vshrl.u32 %v2602, 7
        %v2604 = vsub.s32 %v2601, %v2603
        %v2605 = vrot.slane %v2308, %v2604
        %v2607 = vunpack.c.l.s4 1983009808
        %v2608 = vunpack.c.0.s8 %v2607
        %v2609 = vlaneseq
        %v2610 = vshrl.u32 %v2609, 7
        %v2611 = vsub.s32 %v2608, %v2610
        %v2612 = vrot.slane %v2598, %v2611
        %v2613 = vcombine.high %v2605, %v2605
        %v2614 = vcombine.high %v2612, %v2612
        %v2615 = vcombine.high %v2313, %v2313
        %v2617 = vunpack.c.l.s4 1983009808
        %v2618 = vunpack.c.0.s8 %v2617
        %v2619 = vlaneseq
        %v2620 = vshrl.u32 %v2619, 7
        %v2621 = vsub.s32 %v2618, %v2620
        %v2622 = vrot.slane %v2313, %v2621
        %v2624 = vunpack.c.l.s4 1983009808
        %v2625 = vunpack.c.0.s8 %v2624
        %v2626 = vlaneseq
        %v2627 = vshrl.u32 %v2626, 7
        %v2628 = vsub.s32 %v2625, %v2627
        %v2629 = vrot.slane %v2615, %v2628
        %v2630 = vcombine.high %v2622, %v2622
        %v2631 = vcombine.high %v2629, %v2629
        %v2632 = vcombine.high %v2316, %v2316
        %v2634 = vunpack.c.l.s4 1983009808
        %v2635 = vunpack.c.0.s8 %v2634
        %v2636 = vlaneseq
        %v2637 = vshrl.u32 %v2636, 7
        %v2638 = vsub.s32 %v2635, %v2637
        %v2639 = vrot.slane %v2316, %v2638
        %v2641 = vunpack.c.l.s4 1983009808
        %v2642 = vunpack.c.0.s8 %v2641
        %v2643 = vlaneseq
        %v2644 = vshrl.u32 %v2643, 7
        %v2645 = vsub.s32 %v2642, %v2644
        %v2646 = vrot.slane %v2632, %v2645
        %v2647 = vcombine.high %v2639, %v2639
        %v2648 = vcombine.high %v2646, %v2646
        %v2649 = vcombine.high %v2321, %v2321
        %v2651 = vunpack.c.l.s4 1983009808
        %v2652 = vunpack.c.0.s8 %v2651
        %v2653 = vlaneseq
        %v2654 = vshrl.u32 %v2653, 7
        %v2655 = vsub.s32 %v2652, %v2654
        %v2656 = vrot.slane %v2321, %v2655
        %v2658 = vunpack.c.l.s4 1983009808
        %v2659 = vunpack.c.0.s8 %v2658
        %v2660 = vlaneseq
        %v2661 = vshrl.u32 %v2660, 7
        %v2662 = vsub.s32 %v2659, %v2661
        %v2663 = vrot.slane %v2649, %v2662
        %v2664 = vcombine.high %v2656, %v2656
        %v2665 = vcombine.high %v2663, %v2663
        %v2666 = vcombine.high %v2324, %v2324
        %v2668 = vunpack.c.l.s4 1983009808
        %v2669 = vunpack.c.0.s8 %v2668
        %v2670 = vlaneseq
        %v2671 = vshrl.u32 %v2670, 7
        %v2672 = vsub.s32 %v2669, %v2671
        %v2673 = vrot.slane %v2324, %v2672
        %v2675 = vunpack.c.l.s4 1983009808
        %v2676 = vunpack.c.0.s8 %v2675
        %v2677 = vlaneseq
        %v2678 = vshrl.u32 %v2677, 7
        %v2679 = vsub.s32 %v2676, %v2678
        %v2680 = vrot.slane %v2666, %v2679
        %v2681 = vcombine.high %v2673, %v2673
        %v2682 = vcombine.high %v2680, %v2680
        %v2683 = vcombine.high %v2329, %v2329
        %v2685 = vunpack.c.l.s4 1983009808
        %v2686 = vunpack.c.0.s8 %v2685
        %v2687 = vlaneseq
        %v2688 = vshrl.u32 %v2687, 7
        %v2689 = vsub.s32 %v2686, %v2688
        %v2690 = vrot.slane %v2329, %v2689
        %v2692 = vunpack.c.l.s4 1983009808
        %v2693 = vunpack.c.0.s8 %v2692
        %v2694 = vlaneseq
        %v2695 = vshrl.u32 %v2694, 7
        %v2696 = vsub.s32 %v2693, %v2695
        %v2697 = vrot.slane %v2683, %v2696
        %v2698 = vcombine.high %v2690, %v2690
        %v2699 = vcombine.high %v2697, %v2697
        %v2700 = vcombine.high %v2332, %v2332
        %v2702 = vunpack.c.l.s4 1983009808
        %v2703 = vunpack.c.0.s8 %v2702
        %v2704 = vlaneseq
        %v2705 = vshrl.u32 %v2704, 7
        %v2706 = vsub.s32 %v2703, %v2705
        %v2707 = vrot.slane %v2332, %v2706
        %v2709 = vunpack.c.l.s4 1983009808
        %v2710 = vunpack.c.0.s8 %v2709
        %v2711 = vlaneseq
        %v2712 = vshrl.u32 %v2711, 7
        %v2713 = vsub.s32 %v2710, %v2712
        %v2714 = vrot.slane %v2700, %v2713
        %v2715 = vcombine.high %v2707, %v2707
        %v2716 = vcombine.high %v2714, %v2714
        %v2717 = vcombine.high %v2337, %v2337
        %v2719 = vunpack.c.l.s4 1983009808
        %v2720 = vunpack.c.0.s8 %v2719
        %v2721 = vlaneseq
        %v2722 = vshrl.u32 %v2721, 7
        %v2723 = vsub.s32 %v2720, %v2722
        %v2724 = vrot.slane %v2337, %v2723
        %v2726 = vunpack.c.l.s4 1983009808
        %v2727 = vunpack.c.0.s8 %v2726
        %v2728 = vlaneseq
        %v2729 = vshrl.u32 %v2728, 7
        %v2730 = vsub.s32 %v2727, %v2729
        %v2731 = vrot.slane %v2717, %v2730
        %v2732 = vcombine.high %v2724, %v2724
        %v2733 = vcombine.high %v2731, %v2731
        %v2734 = vcombine.high %v2340, %v2340
        %v2736 = vunpack.c.l.s4 1983009808
        %v2737 = vunpack.c.0.s8 %v2736
        %v2738 = vlaneseq
        %v2739 = vshrl.u32 %v2738, 7
        %v2740 = vsub.s32 %v2737, %v2739
        %v2741 = vrot.slane %v2340, %v2740
        %v2743 = vunpack.c.l.s4 1983009808
        %v2744 = vunpack.c.0.s8 %v2743
        %v2745 = vlaneseq
        %v2746 = vshrl.u32 %v2745, 7
        %v2747 = vsub.s32 %v2744, %v2746
        %v2748 = vrot.slane %v2734, %v2747
        %v2749 = vcombine.high %v2741, %v2741
        %v2750 = vcombine.high %v2748, %v2748
        %v2751 = vcombine.high %v2345, %v2345
        %v2753 = vunpack.c.l.s4 1983009808
        %v2754 = vunpack.c.0.s8 %v2753
        %v2755 = vlaneseq
        %v2756 = vshrl.u32 %v2755, 7
        %v2757 = vsub.s32 %v2754, %v2756
        %v2758 = vrot.slane %v2345, %v2757
        %v2760 = vunpack.c.l.s4 1983009808
        %v2761 = vunpack.c.0.s8 %v2760
        %v2762 = vlaneseq
        %v2763 = vshrl.u32 %v2762, 7
        %v2764 = vsub.s32 %v2761, %v2763
        %v2765 = vrot.slane %v2751, %v2764
        %v2766 = vcombine.high %v2758, %v2758
        %v2767 = vcombine.high %v2765, %v2765
        %v2768 = vcombine.high %v2348, %v2348
        %v2770 = vunpack.c.l.s4 1983009808
        %v2771 = vunpack.c.0.s8 %v2770
        %v2772 = vlaneseq
        %v2773 = vshrl.u32 %v2772, 7
        %v2774 = vsub.s32 %v2771, %v2773
        %v2775 = vrot.slane %v2348, %v2774
        %v2777 = vunpack.c.l.s4 1983009808
        %v2778 = vunpack.c.0.s8 %v2777
        %v2779 = vlaneseq
        %v2780 = vshrl.u32 %v2779, 7
        %v2781 = vsub.s32 %v2778, %v2780
        %v2782 = vrot.slane %v2768, %v2781
        %v2783 = vcombine.high %v2775, %v2775
        %v2784 = vcombine.high %v2782, %v2782
        %v2785 = vcombine.high %v2353, %v2353
        %v2787 = vunpack.c.l.s4 1983009808
        %v2788 = vunpack.c.0.s8 %v2787
        %v2789 = vlaneseq
        %v2790 = vshrl.u32 %v2789, 7
        %v2791 = vsub.s32 %v2788, %v2790
        %v2792 = vrot.slane %v2353, %v2791
        %v2794 = vunpack.c.l.s4 1983009808
        %v2795 = vunpack.c.0.s8 %v2794
        %v2796 = vlaneseq
        %v2797 = vshrl.u32 %v2796, 7
        %v2798 = vsub.s32 %v2795, %v2797
        %v2799 = vrot.slane %v2785, %v2798
        %v2800 = vcombine.high %v2792, %v2792
        %v2801 = vcombine.high %v2799, %v2799
        %v2802 = vcombine.high %v2356, %v2356
        %v2804 = vunpack.c.l.s4 1983009808
        %v2805 = vunpack.c.0.s8 %v2804
        %v2806 = vlaneseq
        %v2807 = vshrl.u32 %v2806, 7
        %v2808 = vsub.s32 %v2805, %v2807
        %v2809 = vrot.slane %v2356, %v2808
        %v2811 = vunpack.c.l.s4 1983009808
        %v2812 = vunpack.c.0.s8 %v2811
        %v2813 = vlaneseq
        %v2814 = vshrl.u32 %v2813, 7
        %v2815 = vsub.s32 %v2812, %v2814
        %v2816 = vrot.slane %v2802, %v2815
        %v2817 = vcombine.high %v2809, %v2809
        %v2818 = vcombine.high %v2816, %v2816
        %v2819 = vcombine.high %v2361, %v2361
        %v2821 = vunpack.c.l.s4 1983009808
        %v2822 = vunpack.c.0.s8 %v2821
        %v2823 = vlaneseq
        %v2824 = vshrl.u32 %v2823, 7
        %v2825 = vsub.s32 %v2822, %v2824
        %v2826 = vrot.slane %v2361, %v2825
        %v2828 = vunpack.c.l.s4 1983009808
        %v2829 = vunpack.c.0.s8 %v2828
        %v2830 = vlaneseq
        %v2831 = vshrl.u32 %v2830, 7
        %v2832 = vsub.s32 %v2829, %v2831
        %v2833 = vrot.slane %v2819, %v2832
        %v2834 = vcombine.high %v2826, %v2826
        %v2835 = vcombine.high %v2833, %v2833
        %v2836 = vcombine.high %v2364, %v2364
        %v2838 = vunpack.c.l.s4 1983009808
        %v2839 = vunpack.c.0.s8 %v2838
        %v2840 = vlaneseq
        %v2841 = vshrl.u32 %v2840, 7
        %v2842 = vsub.s32 %v2839, %v2841
        %v2843 = vrot.slane %v2364, %v2842
        %v2845 = vunpack.c.l.s4 1983009808
        %v2846 = vunpack.c.0.s8 %v2845
        %v2847 = vlaneseq
        %v2848 = vshrl.u32 %v2847, 7
        %v2849 = vsub.s32 %v2846, %v2848
        %v2850 = vrot.slane %v2836, %v2849
        %v2851 = vcombine.high %v2843, %v2843
        %v2852 = vcombine.high %v2850, %v2850
        %v2853 = vcombine.high %v2369, %v2369
        %v2855 = vunpack.c.l.s4 1983009808
        %v2856 = vunpack.c.0.s8 %v2855
        %v2857 = vlaneseq
        %v2858 = vshrl.u32 %v2857, 7
        %v2859 = vsub.s32 %v2856, %v2858
        %v2860 = vrot.slane %v2369, %v2859
        %v2862 = vunpack.c.l.s4 1983009808
        %v2863 = vunpack.c.0.s8 %v2862
        %v2864 = vlaneseq
        %v2865 = vshrl.u32 %v2864, 7
        %v2866 = vsub.s32 %v2863, %v2865
        %v2867 = vrot.slane %v2853, %v2866
        %v2868 = vcombine.high %v2860, %v2860
        %v2869 = vcombine.high %v2867, %v2867
        %v2870 = vcombine.high %v2372, %v2372
        %v2872 = vunpack.c.l.s4 1983009808
        %v2873 = vunpack.c.0.s8 %v2872
        %v2874 = vlaneseq
        %v2875 = vshrl.u32 %v2874, 7
        %v2876 = vsub.s32 %v2873, %v2875
        %v2877 = vrot.slane %v2372, %v2876
        %v2879 = vunpack.c.l.s4 1983009808
        %v2880 = vunpack.c.0.s8 %v2879
        %v2881 = vlaneseq
        %v2882 = vshrl.u32 %v2881, 7
        %v2883 = vsub.s32 %v2880, %v2882
        %v2884 = vrot.slane %v2870, %v2883
        %v2885 = vcombine.high %v2877, %v2877
        %v2886 = vcombine.high %v2884, %v2884
        %v2887 = vcombine.high %v2377, %v2377
        %v2889 = vunpack.c.l.s4 1983009808
        %v2890 = vunpack.c.0.s8 %v2889
        %v2891 = vlaneseq
        %v2892 = vshrl.u32 %v2891, 7
        %v2893 = vsub.s32 %v2890, %v2892
        %v2894 = vrot.slane %v2377, %v2893
        %v2896 = vunpack.c.l.s4 1983009808
        %v2897 = vunpack.c.0.s8 %v2896
        %v2898 = vlaneseq
        %v2899 = vshrl.u32 %v2898, 7
        %v2900 = vsub.s32 %v2897, %v2899
        %v2901 = vrot.slane %v2887, %v2900
        %v2902 = vcombine.high %v2894, %v2894
        %v2903 = vcombine.high %v2901, %v2901
        %v2904 = vcombine.high %v2380, %v2380
        %v2906 = vunpack.c.l.s4 1983009808
        %v2907 = vunpack.c.0.s8 %v2906
        %v2908 = vlaneseq
        %v2909 = vshrl.u32 %v2908, 7
        %v2910 = vsub.s32 %v2907, %v2909
        %v2911 = vrot.slane %v2380, %v2910
        %v2913 = vunpack.c.l.s4 1983009808
        %v2914 = vunpack.c.0.s8 %v2913
        %v2915 = vlaneseq
        %v2916 = vshrl.u32 %v2915, 7
        %v2917 = vsub.s32 %v2914, %v2916
        %v2918 = vrot.slane %v2904, %v2917
        %v2919 = vcombine.high %v2911, %v2911
        %v2920 = vcombine.high %v2918, %v2918
        %v2921 = vcombine.high %v2385, %v2385
        %v2923 = vunpack.c.l.s4 1983009808
        %v2924 = vunpack.c.0.s8 %v2923
        %v2925 = vlaneseq
        %v2926 = vshrl.u32 %v2925, 7
        %v2927 = vsub.s32 %v2924, %v2926
        %v2928 = vrot.slane %v2385, %v2927
        %v2930 = vunpack.c.l.s4 1983009808
        %v2931 = vunpack.c.0.s8 %v2930
        %v2932 = vlaneseq
        %v2933 = vshrl.u32 %v2932, 7
        %v2934 = vsub.s32 %v2931, %v2933
        %v2935 = vrot.slane %v2921, %v2934
        %v2936 = vcombine.high %v2928, %v2928
        %v2937 = vcombine.high %v2935, %v2935
        %v2938 = vcombine.high %v2388, %v2388
        %v2940 = vunpack.c.l.s4 1983009808
        %v2941 = vunpack.c.0.s8 %v2940
        %v2942 = vlaneseq
        %v2943 = vshrl.u32 %v2942, 7
        %v2944 = vsub.s32 %v2941, %v2943
        %v2945 = vrot.slane %v2388, %v2944
        %v2947 = vunpack.c.l.s4 1983009808
        %v2948 = vunpack.c.0.s8 %v2947
        %v2949 = vlaneseq
        %v2950 = vshrl.u32 %v2949, 7
        %v2951 = vsub.s32 %v2948, %v2950
        %v2952 = vrot.slane %v2938, %v2951
        %v2953 = vcombine.high %v2945, %v2945
        %v2954 = vcombine.high %v2952, %v2952
        %v2955 = vcombine.high %v2393, %v2393
        %v2957 = vunpack.c.l.s4 1983009808
        %v2958 = vunpack.c.0.s8 %v2957
        %v2959 = vlaneseq
        %v2960 = vshrl.u32 %v2959, 7
        %v2961 = vsub.s32 %v2958, %v2960
        %v2962 = vrot.slane %v2393, %v2961
        %v2964 = vunpack.c.l.s4 1983009808
        %v2965 = vunpack.c.0.s8 %v2964
        %v2966 = vlaneseq
        %v2967 = vshrl.u32 %v2966, 7
        %v2968 = vsub.s32 %v2965, %v2967
        %v2969 = vrot.slane %v2955, %v2968
        %v2970 = vcombine.high %v2962, %v2962
        %v2971 = vcombine.high %v2969, %v2969
        %v2972 = vcombine.high %v2396, %v2396
        %v2974 = vunpack.c.l.s4 1983009808
        %v2975 = vunpack.c.0.s8 %v2974
        %v2976 = vlaneseq
        %v2977 = vshrl.u32 %v2976, 7
        %v2978 = vsub.s32 %v2975, %v2977
        %v2979 = vrot.slane %v2396, %v2978
        %v2981 = vunpack.c.l.s4 1983009808
        %v2982 = vunpack.c.0.s8 %v2981
        %v2983 = vlaneseq
        %v2984 = vshrl.u32 %v2983, 7
        %v2985 = vsub.s32 %v2982, %v2984
        %v2986 = vrot.slane %v2972, %v2985
        %v2987 = vcombine.high %v2979, %v2979
        %v2988 = vcombine.high %v2986, %v2986
        %v2990 = vunpack.c.l.s4 1983009808
        %v2991 = vunpack.c.0.s8 %v2990
        %v2992 = vlaneseq
        %v2993 = vshrl.u32 %v2992, 7
        %v2994 = vsub.s32 %v2991, %v2993
        %v2995 = vrot.slane %v2401, %v2994
        %v2996 = vcombine.high %v2995, %v2995
        %v2997 = vcombine.low %v2588, %v2596
        %v2998 = vcombine.low %v2595, %v2597
        %v3000 = vunpack.c.l.s4 1983009808
        %v3001 = vunpack.c.0.s8 %v3000
        %v3002 = vlaneseq
        %v3003 = vshrl.u32 %v3002, 7
        %v3004 = vsub.s32 %v3001, %v3003
        %v3005 = vrot.slane %v2997, %v3004
        %v3007 = vunpack.c.l.s4 1983009808
        %v3008 = vunpack.c.0.s8 %v3007
        %v3009 = vlaneseq
        %v3010 = vshrl.u32 %v3009, 7
        %v3011 = vsub.s32 %v3008, %v3010
        %v3012 = vrot.slane %v2998, %v3011
        %v3013 = vcombine.low %v3005, %v3012
        %v3014 = vcombine.low %v2605, %v2613
        %v3016 = vunpack.c.l.s4 1983009808
        %v3017 = vunpack.c.0.s8 %v3016
        %v3018 = vlaneseq
        %v3019 = vshrl.u32 %v3018, 7
        %v3020 = vsub.s32 %v3017, %v3019
        %v3021 = vrot.slane %v3014, %v3020
        %v3023 = vunpack.c.l.s4 1983009808
        %v3024 = vunpack.c.0.s8 %v3023
        %v3025 = vlaneseq
        %v3026 = vshrl.u32 %v3025, 7
        %v3027 = vsub.s32 %v3024, %v3026
        %v3028 = vrot.slane %v2612, %v3027
        %v3029 = vcombine.low %v3021, %v3028
        %v3030 = vcombine.low %v2614, %v2622
        %v3031 = vcombine.low %v2630, %v2629
        %v3033 = vunpack.c.l.s4 1983009808
        %v3034 = vunpack.c.0.s8 %v3033
        %v3035 = vlaneseq
        %v3036 = vshrl.u32 %v3035, 7
        %v3037 = vsub.s32 %v3034, %v3036
        %v3038 = vrot.slane %v3030, %v3037
        %v3040 = vunpack.c.l.s4 1983009808
        %v3041 = vunpack.c.0.s8 %v3040
        %v3042 = vlaneseq
        %v3043 = vshrl.u32 %v3042, 7
        %v3044 = vsub.s32 %v3041, %v3043
        %v3045 = vrot.slane %v3031, %v3044
        %v3046 = vcombine.low %v3038, %v3045
        %v3047 = vcombine.low %v2631, %v2639
        %v3049 = vunpack.c.l.s4 1983009808
        %v3050 = vunpack.c.0.s8 %v3049
        %v3051 = vlaneseq
        %v3052 = vshrl.u32 %v3051, 7
        %v3053 = vsub.s32 %v3050, %v3052
        %v3054 = vrot.slane %v3047, %v3053
        %v3056 = vunpack.c.l.s4 1983009808
        %v3057 = vunpack.c.0.s8 %v3056
        %v3058 = vlaneseq
        %v3059 = vshrl.u32 %v3058, 7
        %v3060 = vsub.s32 %v3057, %v3059
        %v3061 = vrot.slane %v2647, %v3060
        %v3062 = vcombine.low %v3054, %v3061
        %v3063 = vcombine.low %v2646, %v2648
        %v3064 = vcombine.low %v2656, %v2664
        %v3066 = vunpack.c.l.s4 1983009808
        %v3067 = vunpack.c.0.s8 %v3066
        %v3068 = vlaneseq
        %v3069 = vshrl.u32 %v3068, 7
        %v3070 = vsub.s32 %v3067, %v3069
        %v3071 = vrot.slane %v3063, %v3070
        %v3073 = vunpack.c.l.s4 1983009808
        %v3074 = vunpack.c.0.s8 %v3073
        %v3075 = vlaneseq
        %v3076 = vshrl.u32 %v3075, 7
        %v3077 = vsub.s32 %v3074, %v3076
        %v3078 = vrot.slane %v3064, %v3077
        %v3079 = vcombine.low %v3071, %v3078
        %v3080 = vcombine.low %v2663, %v2665
        %v3082 = vunpack.c.l.s4 1983009808
        %v3083 = vunpack.c.0.s8 %v3082
        %v3084 = vlaneseq
        %v3085 = vshrl.u32 %v3084, 7
        %v3086 = vsub.s32 %v3083, %v3085
        %v3087 = vrot.slane %v3080, %v3086
        %v3089 = vunpack.c.l.s4 1983009808
        %v3090 = vunpack.c.0.s8 %v3089
        %v3091 = vlaneseq
        %v3092 = vshrl.u32 %v3091, 7
        %v3093 = vsub.s32 %v3090, %v3092
        %v3094 = vrot.slane %v2673, %v3093
        %v3095 = vcombine.low %v3087, %v3094
        %v3096 = vcombine.low %v2681, %v2680
        %v3097 = vcombine.low %v2682, %v2690
        %v3099 = vunpack.c.l.s4 1983009808
        %v3100 = vunpack.c.0.s8 %v3099
        %v3101 = vlaneseq
        %v3102 = vshrl.u32 %v3101, 7
        %v3103 = vsub.s32 %v3100, %v3102
        %v3104 = vrot.slane %v3096, %v3103
        %v3106 = vunpack.c.l.s4 1983009808
        %v3107 = vunpack.c.0.s8 %v3106
        %v3108 = vlaneseq
        %v3109 = vshrl.u32 %v3108, 7
        %v3110 = vsub.s32 %v3107, %v3109
        %v3111 = vrot.slane %v3097, %v3110
        %v3112 = vcombine.low %v3104, %v3111
        %v3113 = vcombine.low %v2698, %v2697
        %v3115 = vunpack.c.l.s4 1983009808
        %v3116 = vunpack.c.0.s8 %v3115
        %v3117 = vlaneseq
        %v3118 = vshrl.u32 %v3117, 7
        %v3119 = vsub.s32 %v3116, %v3118
        %v3120 = vrot.slane %v3113, %v3119
        %v3122 = vunpack.c.l.s4 1983009808
        %v3123 = vunpack.c.0.s8 %v3122
        %v3124 = vlaneseq
        %v3125 = vshrl.u32 %v3124, 7
        %v3126 = vsub.s32 %v3123, %v3125
        %v3127 = vrot.slane %v2699, %v3126
        %v3128 = vcombine.low %v3120, %v3127
        %v3129 = vcombine.low %v2707, %v2715
        %v3130 = vcombine.low %v2714, %v2716
        %v3132 = vunpack.c.l.s4 1983009808
        %v3133 = vunpack.c.0.s8 %v3132
        %v3134 = vlaneseq
        %v3135 = vshrl.u32 %v3134, 7
        %v3136 = vsub.s32 %v3133, %v3135
        %v3137 = vrot.slane %v3129, %v3136
        %v3139 = vunpack.c.l.s4 1983009808
        %v3140 = vunpack.c.0.s8 %v3139
        %v3141 = vlaneseq
        %v3142 = vshrl.u32 %v3141, 7
        %v3143 = vsub.s32 %v3140, %v3142
        %v3144 = vrot.slane %v3130, %v3143
        %v3145 = vcombine.low %v3137, %v3144
        %v3146 = vcombine.low %v2724, %v2732
        %v3148 = vunpack.c.l.s4 1983009808
        %v3149 = vunpack.c.0.s8 %v3148
        %v3150 = vlaneseq
        %v3151 = vshrl.u32 %v3150, 7
        %v3152 = vsub.s32 %v3149, %v3151
        %v3153 = vrot.slane %v3146, %v3152
        %v3155 = vunpack.c.l.s4 1983009808
        %v3156 = vunpack.c.0.s8 %v3155
        %v3157 = vlaneseq
        %v3158 = vshrl.u32 %v3157, 7
        %v3159 = vsub.s32 %v3156, %v3158
        %v3160 = vrot.slane %v2731, %v3159
        %v3161 = vcombine.low %v3153, %v3160
        %v3162 = vcombine.low %v2733, %v2741
        %v3163 = vcombine.low %v2749, %v2748
        %v3165 = vunpack.c.l.s4 1983009808
        %v3166 = vunpack.c.0.s8 %v3165
        %v3167 = vlaneseq
        %v3168 = vshrl.u32 %v3167, 7
        %v3169 = vsub.s32 %v3166, %v3168
        %v3170 = vrot.slane %v3162, %v3169
        %v3172 = vunpack.c.l.s4 1983009808
        %v3173 = vunpack.c.0.s8 %v3172
        %v3174 = vlaneseq
        %v3175 = vshrl.u32 %v3174, 7
        %v3176 = vsub.s32 %v3173, %v3175
        %v3177 = vrot.slane %v3163, %v3176
        %v3178 = vcombine.low %v3170, %v3177
        %v3179 = vcombine.low %v2750, %v2758
        %v3181 = vunpack.c.l.s4 1983009808
        %v3182 = vunpack.c.0.s8 %v3181
        %v3183 = vlaneseq
        %v3184 = vshrl.u32 %v3183, 7
        %v3185 = vsub.s32 %v3182, %v3184
        %v3186 = vrot.slane %v3179, %v3185
        %v3188 = vunpack.c.l.s4 1983009808
        %v3189 = vunpack.c.0.s8 %v3188
        %v3190 = vlaneseq
        %v3191 = vshrl.u32 %v3190, 7
        %v3192 = vsub.s32 %v3189, %v3191
        %v3193 = vrot.slane %v2766, %v3192
        %v3194 = vcombine.low %v3186, %v3193
        %v3195 = vcombine.low %v2765, %v2767
        %v3196 = vcombine.low %v2775, %v2783
        %v3198 = vunpack.c.l.s4 1983009808
        %v3199 = vunpack.c.0.s8 %v3198
        %v3200 = vlaneseq
        %v3201 = vshrl.u32 %v3200, 7
        %v3202 = vsub.s32 %v3199, %v3201
        %v3203 = vrot.slane %v3195, %v3202
        %v3205 = vunpack.c.l.s4 1983009808
        %v3206 = vunpack.c.0.s8 %v3205
        %v3207 = vlaneseq
        %v3208 = vshrl.u32 %v3207, 7
        %v3209 = vsub.s32 %v3206, %v3208
        %v3210 = vrot.slane %v3196, %v3209
        %v3211 = vcombine.low %v3203, %v3210
        %v3212 = vcombine.low %v2782, %v2784
        %v3214 = vunpack.c.l.s4 1983009808
        %v3215 = vunpack.c.0.s8 %v3214
        %v3216 = vlaneseq
        %v3217 = vshrl.u32 %v3216, 7
        %v3218 = vsub.s32 %v3215, %v3217
        %v3219 = vrot.slane %v3212, %v3218
        %v3221 = vunpack.c.l.s4 1983009808
        %v3222 = vunpack.c.0.s8 %v3221
        %v3223 = vlaneseq
        %v3224 = vshrl.u32 %v3223, 7
        %v3225 = vsub.s32 %v3222, %v3224
        %v3226 = vrot.slane %v2792, %v3225
        %v3227 = vcombine.low %v3219, %v3226
        %v3228 = vcombine.low %v2800, %v2799
        %v3229 = vcombine.low %v2801, %v2809
        %v3231 = vunpack.c.l.s4 1983009808
        %v3232 = vunpack.c.0.s8 %v3231
        %v3233 = vlaneseq
        %v3234 = vshrl.u32 %v3233, 7
        %v3235 = vsub.s32 %v3232, %v3234
        %v3236 = vrot.slane %v3228, %v3235
        %v3238 = vunpack.c.l.s4 1983009808
        %v3239 = vunpack.c.0.s8 %v3238
        %v3240 = vlaneseq
        %v3241 = vshrl.u32 %v3240, 7
        %v3242 = vsub.s32 %v3239, %v3241
        %v3243 = vrot.slane %v3229, %v3242
        %v3244 = vcombine.low %v3236, %v3243
        %v3245 = vcombine.low %v2817, %v2816
        %v3247 = vunpack.c.l.s4 1983009808
        %v3248 = vunpack.c.0.s8 %v3247
        %v3249 = vlaneseq
        %v3250 = vshrl.u32 %v3249, 7
        %v3251 = vsub.s32 %v3248, %v3250
        %v3252 = vrot.slane %v3245, %v3251
        %v3254 = vunpack.c.l.s4 1983009808
        %v3255 = vunpack.c.0.s8 %v3254
        %v3256 = vlaneseq
        %v3257 = vshrl.u32 %v3256, 7
        %v3258 = vsub.s32 %v3255, %v3257
        %v3259 = vrot.slane %v2818, %v3258
        %v3260 = vcombine.low %v3252, %v3259
        %v3261 = vcombine.low %v2826, %v2834
        %v3262 = vcombine.low %v2833, %v2835
        %v3264 = vunpack.c.l.s4 1983009808
        %v3265 = vunpack.c.0.s8 %v3264
        %v3266 = vlaneseq
        %v3267 = vshrl.u32 %v3266, 7
        %v3268 = vsub.s32 %v3265, %v3267
        %v3269 = vrot.slane %v3261, %v3268
        %v3271 = vunpack.c.l.s4 1983009808
        %v3272 = vunpack.c.0.s8 %v3271
        %v3273 = vlaneseq
        %v3274 = vshrl.u32 %v3273, 7
        %v3275 = vsub.s32 %v3272, %v3274
        %v3276 = vrot.slane %v3262, %v3275
        %v3277 = vcombine.low %v3269, %v3276
        %v3278 = vcombine.low %v2843, %v2851
        %v3280 = vunpack.c.l.s4 1983009808
        %v3281 = vunpack.c.0.s8 %v3280
        %v3282 = vlaneseq
        %v3283 = vshrl.u32 %v3282, 7
        %v3284 = vsub.s32 %v3281, %v3283
        %v3285 = vrot.slane %v3278, %v3284
        %v3287 = vunpack.c.l.s4 1983009808
        %v3288 = vunpack.c.0.s8 %v3287
        %v3289 = vlaneseq
        %v3290 = vshrl.u32 %v3289, 7
        %v3291 = vsub.s32 %v3288, %v3290
        %v3292 = vrot.slane %v2850, %v3291
        %v3293 = vcombine.low %v3285, %v3292
        %v3294 = vcombine.low %v2852, %v2860
        %v3295 = vcombine.low %v2868, %v2867
        %v3297 = vunpack.c.l.s4 1983009808
        %v3298 = vunpack.c.0.s8 %v3297
        %v3299 = vlaneseq
        %v3300 = vshrl.u32 %v3299, 7
        %v3301 = vsub.s32 %v3298, %v3300
        %v3302 = vrot.slane %v3294, %v3301
        %v3304 = vunpack.c.l.s4 1983009808
        %v3305 = vunpack.c.0.s8 %v3304
        %v3306 = vlaneseq
        %v3307 = vshrl.u32 %v3306, 7
        %v3308 = vsub.s32 %v3305, %v3307
        %v3309 = vrot.slane %v3295, %v3308
        %v3310 = vcombine.low %v3302, %v3309
        %v3311 = vcombine.low %v2869, %v2877
        %v3313 = vunpack.c.l.s4 1983009808
        %v3314 = vunpack.c.0.s8 %v3313
        %v3315 = vlaneseq
        %v3316 = vshrl.u32 %v3315, 7
        %v3317 = vsub.s32 %v3314, %v3316
        %v3318 = vrot.slane %v3311, %v3317
        %v3320 = vunpack.c.l.s4 1983009808
        %v3321 = vunpack.c.0.s8 %v3320
        %v3322 = vlaneseq
        %v3323 = vshrl.u32 %v3322, 7
        %v3324 = vsub.s32 %v3321, %v3323
        %v3325 = vrot.slane %v2885, %v3324
        %v3326 = vcombine.low %v3318, %v3325
        %v3327 = vcombine.low %v2884, %v2886
        %v3328 = vcombine.low %v2894, %v2902
        %v3330 = vunpack.c.l.s4 1983009808
        %v3331 = vunpack.c.0.s8 %v3330
        %v3332 = vlaneseq
        %v3333 = vshrl.u32 %v3332, 7
        %v3334 = vsub.s32 %v3331, %v3333
        %v3335 = vrot.slane %v3327, %v3334
        %v3337 = vunpack.c.l.s4 1983009808
        %v3338 = vunpack.c.0.s8 %v3337
        %v3339 = vlaneseq
        %v3340 = vshrl.u32 %v3339, 7
        %v3341 = vsub.s32 %v3338, %v3340
        %v3342 = vrot.slane %v3328, %v3341
        %v3343 = vcombine.low %v3335, %v3342
        %v3344 = vcombine.low %v2901, %v2903
        %v3346 = vunpack.c.l.s4 1983009808
        %v3347 = vunpack.c.0.s8 %v3346
        %v3348 = vlaneseq
        %v3349 = vshrl.u32 %v3348, 7
        %v3350 = vsub.s32 %v3347, %v3349
        %v3351 = vrot.slane %v3344, %v3350
        %v3353 = vunpack.c.l.s4 1983009808
        %v3354 = vunpack.c.0.s8 %v3353
        %v3355 = vlaneseq
        %v3356 = vshrl.u32 %v3355, 7
        %v3357 = vsub.s32 %v3354, %v3356
        %v3358 = vrot.slane %v2911, %v3357
        %v3359 = vcombine.low %v3351, %v3358
        %v3360 = vcombine.low %v2919, %v2918
        %v3361 = vcombine.low %v2920, %v2928
        %v3363 = vunpack.c.l.s4 1983009808
        %v3364 = vunpack.c.0.s8 %v3363
        %v3365 = vlaneseq
        %v3366 = vshrl.u32 %v3365, 7
        %v3367 = vsub.s32 %v3364, %v3366
        %v3368 = vrot.slane %v3360, %v3367
        %v3370 = vunpack.c.l.s4 1983009808
        %v3371 = vunpack.c.0.s8 %v3370
        %v3372 = vlaneseq
        %v3373 = vshrl.u32 %v3372, 7
        %v3374 = vsub.s32 %v3371, %v3373
        %v3375 = vrot.slane %v3361, %v3374
        %v3376 = vcombine.low %v3368, %v3375
        %v3377 = vcombine.low %v2936, %v2935
        %v3379 = vunpack.c.l.s4 1983009808
        %v3380 = vunpack.c.0.s8 %v3379
        %v3381 = vlaneseq
        %v3382 = vshrl.u32 %v3381, 7
        %v3383 = vsub.s32 %v3380, %v3382
        %v3384 = vrot.slane %v3377, %v3383
        %v3386 = vunpack.c.l.s4 1983009808
        %v3387 = vunpack.c.0.s8 %v3386
        %v3388 = vlaneseq
        %v3389 = vshrl.u32 %v3388, 7
        %v3390 = vsub.s32 %v3387, %v3389
        %v3391 = vrot.slane %v2937, %v3390
        %v3392 = vcombine.low %v3384, %v3391
        %v3393 = vcombine.low %v2945, %v2953
        %v3394 = vcombine.low %v2952, %v2954
        %v3396 = vunpack.c.l.s4 1983009808
        %v3397 = vunpack.c.0.s8 %v3396
        %v3398 = vlaneseq
        %v3399 = vshrl.u32 %v3398, 7
        %v3400 = vsub.s32 %v3397, %v3399
        %v3401 = vrot.slane %v3393, %v3400
        %v3403 = vunpack.c.l.s4 1983009808
        %v3404 = vunpack.c.0.s8 %v3403
        %v3405 = vlaneseq
        %v3406 = vshrl.u32 %v3405, 7
        %v3407 = vsub.s32 %v3404, %v3406
        %v3408 = vrot.slane %v3394, %v3407
        %v3409 = vcombine.low %v3401, %v3408
        %v3410 = vcombine.low %v2962, %v2970
        %v3412 = vunpack.c.l.s4 1983009808
        %v3413 = vunpack.c.0.s8 %v3412
        %v3414 = vlaneseq
        %v3415 = vshrl.u32 %v3414, 7
        %v3416 = vsub.s32 %v3413, %v3415
        %v3417 = vrot.slane %v3410, %v3416
        %v3419 = vunpack.c.l.s4 1983009808
        %v3420 = vunpack.c.0.s8 %v3419
        %v3421 = vlaneseq
        %v3422 = vshrl.u32 %v3421, 7
        %v3423 = vsub.s32 %v3420, %v3422
        %v3424 = vrot.slane %v2969, %v3423
        %v3425 = vcombine.low %v3417, %v3424
        %v3426 = vcombine.low %v2971, %v2979
        %v3427 = vcombine.low %v2987, %v2986
        %v3429 = vunpack.c.l.s4 1983009808
        %v3430 = vunpack.c.0.s8 %v3429
        %v3431 = vlaneseq
        %v3432 = vshrl.u32 %v3431, 7
        %v3433 = vsub.s32 %v3430, %v3432
        %v3434 = vrot.slane %v3426, %v3433
        %v3436 = vunpack.c.l.s4 1983009808
        %v3437 = vunpack.c.0.s8 %v3436
        %v3438 = vlaneseq
        %v3439 = vshrl.u32 %v3438, 7
        %v3440 = vsub.s32 %v3437, %v3439
        %v3441 = vrot.slane %v3427, %v3440
        %v3442 = vcombine.low %v3434, %v3441
        %v3443 = vcombine.low %v2988, %v2995
        %v3445 = vunpack.c.l.s4 1983009808
        %v3446 = vunpack.c.0.s8 %v3445
        %v3447 = vlaneseq
        %v3448 = vshrl.u32 %v3447, 7
        %v3449 = vsub.s32 %v3446, %v3448
        %v3450 = vrot.slane %v3443, %v3449
        %v3452 = vunpack.c.l.s4 1983009808
        %v3453 = vunpack.c.0.s8 %v3452
        %v3454 = vlaneseq
        %v3455 = vshrl.u32 %v3454, 7
        %v3456 = vsub.s32 %v3453, %v3455
        %v3457 = vrot.slane %v2996, %v3456
        %v3458 = vcombine.low %v3450, %v3457
        %3487 = vst.msk [vmem:[%s194] sm:$0xff] %vm1059, %v3013
        %vm3488 = vcmask 62464
        %3489 = vst.msk [vmem:[%s194 + $0x8] sm:$0x3f] %vm3488, %v3029
        %3490 = vst.msk [vmem:[%s194 + $0x10] sm:$0xff] %vm1059, %v3046
        %3491 = vst.msk [vmem:[%s194 + $0x18] sm:$0x3f] %vm3488, %v3062
        %3492 = vst.msk [vmem:[%s194 + $0x20] sm:$0xff] %vm1059, %v3079
        %3493 = vst.msk [vmem:[%s194 + $0x28] sm:$0x3f] %vm3488, %v3095
        %3494 = vst.msk [vmem:[%s194 + $0x30] sm:$0xff] %vm1059, %v3112
        %3495 = vst.msk [vmem:[%s194 + $0x38] sm:$0x3f] %vm3488, %v3128
        %3496 = vst.msk [vmem:[%s194 + $0x40] sm:$0xff] %vm1059, %v3145
        %3497 = vst.msk [vmem:[%s194 + $0x48] sm:$0x3f] %vm3488, %v3161
        %3498 = vst.msk [vmem:[%s194 + $0x50] sm:$0xff] %vm1059, %v3178
        %3499 = vst.msk [vmem:[%s194 + $0x58] sm:$0x3f] %vm3488, %v3194
        %3500 = vst.msk [vmem:[%s194 + $0x60] sm:$0xff] %vm1059, %v3211
        %3501 = vst.msk [vmem:[%s194 + $0x68] sm:$0x3f] %vm3488, %v3227
        %3502 = vst.msk [vmem:[%s194 + $0x70] sm:$0xff] %vm1059, %v3244
        %3503 = vst.msk [vmem:[%s194 + $0x78] sm:$0x3f] %vm3488, %v3260
        %3504 = vst.msk [vmem:[%s194 + $0x80] sm:$0xff] %vm1059, %v3277
        %3505 = vst.msk [vmem:[%s194 + $0x88] sm:$0x3f] %vm3488, %v3293
        %3506 = vst.msk [vmem:[%s194 + $0x90] sm:$0xff] %vm1059, %v3310
        %3507 = vst.msk [vmem:[%s194 + $0x98] sm:$0x3f] %vm3488, %v3326
        %3508 = vst.msk [vmem:[%s194 + $0xa0] sm:$0xff] %vm1059, %v3343
        %3509 = vst.msk [vmem:[%s194 + $0xa8] sm:$0x3f] %vm3488, %v3359
        %3510 = vst.msk [vmem:[%s194 + $0xb0] sm:$0xff] %vm1059, %v3376
        %3511 = vst.msk [vmem:[%s194 + $0xb8] sm:$0x3f] %vm3488, %v3392
        %3512 = vst.msk [vmem:[%s194 + $0xc0] sm:$0xff] %vm1059, %v3409
        %3513 = vst.msk [vmem:[%s194 + $0xc8] sm:$0x3f] %vm3488, %v3425
        %3514 = vst.msk [vmem:[%s194 + $0xd0] sm:$0xff] %vm1059, %v3442
        %3515 = vst.msk [vmem:[%s194 + $0xd8] sm:$0x3f] %vm3488, %v3458
        %p3516 = scmp.lt.s32.totalorder %s18, 1
        %s3517 = scalar_select %p3516, %s18, 1
        %s3518 = smul.addr %s3517, 28
        %s3519 = smul.addr %s3518, 8
        %s3520 = scalar_lea.vmem %s2, %s3519
        // Predicated region
        $region33: #{tpu_custom_call.1} parent=27 // pred_check
          %p3521 = pneg %p83
        $region34: #{tpu_custom_call.1} parent=27 // pred_check_branch
          %3523 = sbr.rel (%p3521) target = $region36
        $region35: #{tpu_custom_call.1} parent=27 // pred_region
          _
        $region36: #{tpu_custom_call.1} parent=27 // pred_fallthru
          _
        // Predicated region
        $region37: #{tpu_custom_call.1} parent=27 // pred_check
          %p3524 = pneg %p104
        $region38: #{tpu_custom_call.1} parent=27 // pred_check_branch
          %3526 = sbr.rel (%p3524) target = $region40
        $region39: #{tpu_custom_call.1} parent=27 // pred_region
          %s3528 = ssub.s32 16, 16
          %3529 = vsyncadd [#allocation3], %s3528
          %s3531 = sshll.u32 [#allocation2], 4
          %s3532 = int_to_ptr.vmem [resolvable:$true] %s3531
          %3534 = dma.vmem_to_hbm [thread:$0]  %s3532, 16, %s3, [#allocation3]
        $region40: #{tpu_custom_call.1} parent=27 // pred_fallthru
          _
        // Predicated region
        $region41: #{tpu_custom_call.1} parent=27 // pred_check
          %p3535 = pneg %p125
        $region42: #{tpu_custom_call.1} parent=27 // pred_check_branch
          %3537 = sbr.rel (%p3535) target = $region44
        $region43: #{tpu_custom_call.1} parent=27 // pred_region
          %s3539 = ssub.s32 16, 16
          %3540 = vsyncadd [#allocation5], %s3539
          %s3542 = sshll.u32 [#allocation4], 4
          %s3543 = int_to_ptr.vmem [resolvable:$true] %s3542
          %3545 = dma.vmem_to_hbm [thread:$0]  %s3543, 16, %s4, [#allocation5]
        $region44: #{tpu_custom_call.1} parent=27 // pred_fallthru
          _
        // Predicated region
        $region45: #{tpu_custom_call.1} parent=27 // pred_check
          %p3546 = pneg %p104
        $region46: #{tpu_custom_call.1} parent=27 // pred_check_branch
          %3548 = sbr.rel (%p3546) target = $region48
        $region47: #{tpu_custom_call.1} parent=27 // pred_region
          %3549 = dma.done [#allocation3], 16
        $region48: #{tpu_custom_call.1} parent=27 // pred_fallthru
          _
        // Predicated region
        $region49: #{tpu_custom_call.1} parent=27 // pred_check
          %p3550 = pneg %p125
        $region50: #{tpu_custom_call.1} parent=27 // pred_check_branch
          %3552 = sbr.rel (%p3550) target = $region52
        $region51: #{tpu_custom_call.1} parent=27 // pred_region
          %3553 = dma.done [#allocation5], 16
        $region52: #{tpu_custom_call.1} parent=27 // pred_fallthru
          _
      $region28: #{tpu_custom_call.1} parent=5 // pred_fallthru
        _
      %p3554 = scmp.le.s32.totalorder 2, %s13
      // Predicated region
      $region53: #{tpu_custom_call.1} parent=5 // pred_check
        %p3555 = pneg %p3554
      $region54: #{tpu_custom_call.1} parent=5 // pred_check_branch
        %3557 = sbr.rel (%p3555) target = $region56
      $region55: #{tpu_custom_call.1} parent=5 // pred_region
        %s3558 = ssub.s32 %s13, 2
        // Predicated region
        $region57: #{tpu_custom_call.1} parent=55 // pred_check
          %p3559 = pneg %p89
        $region58: #{tpu_custom_call.1} parent=55 // pred_check_branch
          %3561 = sbr.rel (%p3559) target = $region60
        $region59: #{tpu_custom_call.1} parent=55 // pred_region
          %p3562 = scmp.lt.s32.totalorder %s19, 1
          %s3563 = scalar_select %p3562, %s19, 1
          %s3564 = smul.addr %s3563, 28
          %s3565 = smul.addr %s3564, 8
          %s3566 = scalar_lea.vmem %s2, %s3565
        $region60: #{tpu_custom_call.1} parent=55 // pred_fallthru
          _
      $region56: #{tpu_custom_call.1} parent=5 // pred_fallthru
        _
    $region6: #{tpu_custom_call.1} parent=1 // loop_footer
      %s17 = sadd.s32 1, %s13
    $region7: #{tpu_custom_call.1} parent=1 // loop_footer_branch
      %12 = sbr.rel target = $region3
    $region8: #{tpu_custom_call.1} parent=1 // loop_exit
      _
    %3567 = vsyncpa [#allocation3], 1
    %s3568 = scalar_lea.sflag [#allocation3], 1
    %3569 = vsyncpa %s3568, 1
    %3570 = vsyncpa [#allocation5], 1

</llo_original>
